<compile_context>
chip_gen: v7x
topology: tpu7x:2x2x1
jax: 0.10.0
libtpu: 0.0.40
codegen_flags: <defaults>
</compile_context>

<pallas_src>
import jax
import jax.numpy as jnp
from jax import lax
from jax.experimental import pallas as pl
from jax.experimental.pallas import tpu as pltpu


# ----------------------------------------------------------------------------
# Pallas kernel: fused (im2col matmul + folded-BN bias + ReLU) on one row tile
# ----------------------------------------------------------------------------
def _conv_block_kernel(p_ref, w_ref, b_ref, o_ref):
    """p_ref: (TM, GK) bf16 packed patches
       w_ref: (GK, GC) bf16 block-diagonal BN-folded weights
       b_ref: (1, GC)  f32  BN-folded bias
       o_ref: (TM, GC) bf16 lane-dense output (GC == 128 when C_out | 128)."""
    acc = jnp.dot(p_ref[...], w_ref[...], preferred_element_type=jnp.float32)
    acc = acc + b_ref[...]
    o_ref[...] = jnp.maximum(acc, 0.0).astype(o_ref.dtype)


_UNIT = 16  # bf16 sublane tile: keeps both bf16 input and output blocks aligned


def _pick_row_tile(m_rows, target):
    """Row tile (in packed rows): big, multiple of 16, and leaving >=2 grid
    steps when the problem is large enough (v7x has 2 TensorCores)."""
    target = max(_UNIT, (target // _UNIT) * _UNIT)
    if m_rows >= 2 * _UNIT:
        half = max(_UNIT, (m_rows // 2) // _UNIT * _UNIT)
        return min(target, half)
    return _UNIT


def _im2col_stride2(x):
    """x: (B, H, W, C) -> patches (B, Ho, Wo, 9*C) of a 3x3/stride-2/pad-1 conv."""
    B, H, W, C = x.shape
    Ho, Wo = (H + 1) // 2, (W + 1) // 2
    xp = jnp.pad(x, ((0, 0), (1, 1), (1, 1), (0, 0)))
    cols = []
    for ky in range(3):
        for kx in range(3):
            cols.append(xp[:, ky:ky + 2 * Ho - 1:2, kx:kx + 2 * Wo - 1:2, :])
    return jnp.concatenate(cols, axis=-1), (Ho, Wo)


def _fold_bn(w, b, gamma, beta, mean, var, eps=1e-5):
    """Fold inference-mode BatchNorm2d into the conv weight/bias (f32)."""
    scale = gamma * lax.rsqrt(var + eps)              # (Cout,)
    w_eff = w * scale                                 # (3,3,Cin,Cout)
    b_eff = (b - mean) * scale + beta                 # (Cout,)
    return w_eff, b_eff


def conv_block_forward(x_nhwc, w_eff, b_eff, *, row_tile_target=512):
    """One ConvBlock (repeats=1): 3x3 stride-2 pad-1 conv + folded BN + ReLU.
    x_nhwc: (B, H, W, Cin) bf16 -> (B, Ho, Wo, Cout) bf16."""
    B, H, W, Cin = x_nhwc.shape
    Cout = w_eff.shape[-1]
    K = 9 * Cin

    patches, (Ho, Wo) = _im2col_stride2(x_nhwc)
    N = B * Ho * Wo
    P = patches.reshape(N, K).astype(jnp.bfloat16)

    # Lane-dense packing: g consecutive output rows side-by-side along lanes so
    # every store is a full 128-lane unmasked vst and the output DMA is dense.
    g = 128 // Cout if (Cout <= 128 and 128 % Cout == 0) else 1
    GK, GC = g * K, g * Cout

    M = -(-N // g)                                   # packed rows
    tm = _pick_row_tile(M, row_tile_target)
    M_pad = -(-M // tm) * tm
    N_pad = M_pad * g
    if N_pad != N:
        P = jnp.pad(P, ((0, N_pad - N), (0, 0)))
    Pp = P.reshape(M_pad, GK)                        # row-major regroup (free)

    w2d = w_eff.reshape(K, Cout)                     # f32, BN-folded
    w_bd = jnp.kron(jnp.eye(g, dtype=w2d.dtype), w2d).astype(jnp.bfloat16)
    b_bd = jnp.tile(b_eff.reshape(1, Cout), (1, g)).astype(jnp.float32)

    grid_m = M_pad // tm
    cost = pl.CostEstimate(
        flops=2 * M_pad * GK * GC,
        transcendentals=0,
        bytes_accessed=(M_pad * GK * 2 + GK * GC * 2 + GC * 4 + M_pad * GC * 2),
    )

    out = pl.pallas_call(
        _conv_block_kernel,
        out_shape=jax.ShapeDtypeStruct((M_pad, GC), jnp.bfloat16),
        grid_spec=pltpu.PrefetchScalarGridSpec(
            num_scalar_prefetch=0,
            grid=(grid_m,),
            in_specs=[
                pl.BlockSpec((tm, GK), lambda i: (i, 0)),    # patch rows
                pl.BlockSpec((GK, GC), lambda i: (0, 0)),    # full weights
                pl.BlockSpec((1, GC), lambda i: (0, 0)),     # full bias
            ],
            out_specs=pl.BlockSpec((tm, GC), lambda i: (i, 0)),
        ),
        compiler_params=pltpu.CompilerParams(
            dimension_semantics=("parallel",),
            vmem_limit_bytes=32 * 1024 * 1024,   # safe on v5e/v6e/v7x
        ),
        cost_estimate=cost,
    )(Pp, w_bd, b_bd)

    out = out.reshape(N_pad, Cout)[:N]
    return out.reshape(B, Ho, Wo, Cout)


def convnet_forward(x_nchw, params, *, flatten=False, row_tile_target=512):
    """ConvNet forward: x (B, Cin, H, W) f32 -> (B, Cout, Ho, Wo) f32."""
    x = jnp.transpose(x_nchw, (0, 2, 3, 1)).astype(jnp.bfloat16)   # NHWC, bf16
    for (w, b, gamma, beta, mean, var) in params:
        w_eff, b_eff = _fold_bn(w, b, gamma, beta, mean, var)
        x = conv_block_forward(x, w_eff, b_eff, row_tile_target=row_tile_target)
    out = jnp.transpose(x, (0, 3, 1, 2)).astype(jnp.float32)       # back to NCHW
    if flatten:
        out = out.reshape(out.shape[0], -1)                        # (B, C*H*W)
    return out


def init_convnet_params(key, input_dim, hidden_dims):
    """Deterministic conv + BatchNorm parameters for each ConvBlock."""
    params = []
    cin = input_dim
    for cout in hidden_dims:
        key, kw, kb, kg, kbt, km, kv = jax.random.split(key, 7)
        fan_in = 9 * cin
        w = jax.random.normal(kw, (3, 3, cin, cout), jnp.float32) * jnp.sqrt(2.0 / fan_in)
        b = jax.random.normal(kb, (cout,), jnp.float32) * 0.1
        gamma = jax.random.uniform(kg, (cout,), jnp.float32, 0.5, 1.5)
        beta = jax.random.normal(kbt, (cout,), jnp.float32) * 0.1
        mean = jax.random.normal(km, (cout,), jnp.float32) * 0.1
        var = jax.random.uniform(kv, (cout,), jnp.float32, 0.5, 1.5)
        params.append((w, b, gamma, beta, mean, var))
        cin = cout
    return params


def reference_forward(x_nchw, params, *, flatten=False):
    """Pure-JAX/XLA reference with the same numerics choices (bf16 operands,
    f32 accumulation, folded inference-mode BN, bf16 activations)."""
    x = jnp.transpose(x_nchw, (0, 2, 3, 1)).astype(jnp.bfloat16)
    for (w, b, gamma, beta, mean, var) in params:
        w_eff, b_eff = _fold_bn(w, b, gamma, beta, mean, var)
        y = lax.conv_general_dilated(
            x, w_eff.astype(jnp.bfloat16),
            window_strides=(2, 2), padding=((1, 1), (1, 1)),
            dimension_numbers=("NHWC", "HWIO", "NHWC"),
            preferred_element_type=jnp.float32)
        y = jnp.maximum(y + b_eff.astype(jnp.float32), 0.0)
        x = y.astype(jnp.bfloat16)
    out = jnp.transpose(x, (0, 3, 1, 2)).astype(jnp.float32)
    if flatten:
        out = out.reshape(out.shape[0], -1)
    return out


if __name__ == "__main__":
    # Small config consistent with the module:
    #   ConvNet(input_dim=1, hidden_dims=[16, 16, 32, 32], kernels=3,
    #           image_size=[32, 32], residual_link=True, flatten=False)
    # Four stride-2 blocks: 32 -> 16 -> 8 -> 4 -> 2 spatial.
    B = 2
    INPUT_DIM = 1
    HIDDEN_DIMS = [16, 16, 32, 32]
    H = W = 32

    key = jax.random.PRNGKey(0)
    kx, kp = jax.random.split(key)
    x = jax.random.normal(kx, (B, INPUT_DIM, H, W), jnp.float32)
    params = init_convnet_params(kp, INPUT_DIM, HIDDEN_DIMS)

    fwd = jax.jit(convnet_forward)
    out = jax.block_until_ready(fwd(x, params))

    ref = reference_forward(x, params)
    assert out.shape == (B, HIDDEN_DIMS[-1], H // 16, W // 16), out.shape
    max_err = float(jnp.max(jnp.abs(out - ref)))
    assert jnp.allclose(out, ref, atol=2e-2, rtol=2e-2), max_err

    print("KERNEL_OK")
</pallas_src>

<mosaic_0001>
module attributes {stable_mosaic.version = 11 : i64} {
  func.func @_conv_block_kernel(%arg0: i32, %arg1: memref<32x72xbf16, #tpu.memory_space<vmem>>, %arg2: memref<72x128xbf16, #tpu.memory_space<vmem>>, %arg3: memref<1x128xf32, #tpu.memory_space<vmem>>, %arg4: memref<32x128xbf16, #tpu.memory_space<vmem>>) attributes {dimension_semantics = [#tpu.dimension_semantics<parallel>], iteration_bounds = array<i64: 2>, scalar_prefetch = 0 : i64, scratch_operands = 0 : i64, tpu.core_type = #tpu.core_type<tc>, window_params = [{transform_indices = @transform_0, window_bounds = array<i64: 32, 72>}, {pipeline_mode = #tpu.pipeline_mode<synchronous>, transform_indices = @transform_1, window_bounds = array<i64: 72, 128>}, {pipeline_mode = #tpu.pipeline_mode<synchronous>, transform_indices = @transform_2, window_bounds = array<i64: 1, 128>}, {transform_indices = @transform_3, window_bounds = array<i64: 32, 128>}]} {
    %c0 = arith.constant 0 : index
    %c0_0 = arith.constant 0 : index
    %0 = vector.load %arg1[%c0, %c0_0] : memref<32x72xbf16, #tpu.memory_space<vmem>>, vector<32x72xbf16>
    %c0_1 = arith.constant 0 : index
    %c0_2 = arith.constant 0 : index
    %1 = vector.load %arg2[%c0_1, %c0_2] : memref<72x128xbf16, #tpu.memory_space<vmem>>, vector<72x128xbf16>
    %cst = arith.constant dense<0.000000e+00> : vector<32x128xf32>
    %2 = tpu.matmul %0, %1, %cst {dimension_numbers = #tpu.dot_dimension_numbers<[1], [0], [0], [1], [0, 0, 1, 1], [], []>} : vector<32x72xbf16>, vector<72x128xbf16>, vector<32x128xf32> -> vector<32x128xf32>
    %c0_3 = arith.constant 0 : index
    %c0_4 = arith.constant 0 : index
    %3 = vector.load %arg3[%c0_3, %c0_4] : memref<1x128xf32, #tpu.memory_space<vmem>>, vector<1x128xf32>
    %4 = vector.broadcast %3 : vector<1x128xf32> to vector<32x128xf32>
    %5 = arith.addf %2, %4 : vector<32x128xf32>
    %cst_5 = arith.constant 0.000000e+00 : f32
    %6 = vector.broadcast %cst_5 : f32 to vector<32x128xf32>
    %7 = arith.maximumf %5, %6 : vector<32x128xf32>
    %8 = arith.truncf %7 : vector<32x128xf32> to vector<32x128xbf16>
    %c0_6 = arith.constant 0 : index
    %c0_7 = arith.constant 0 : index
    %9 = vector.load %arg4[%c0_6, %c0_7] : memref<32x128xbf16, #tpu.memory_space<vmem>>, vector<32x128xbf16>
    tpu.vector_store %arg4[%c0_6, %c0_7], %8 {strides = array<i32>} : memref<32x128xbf16, #tpu.memory_space<vmem>>, vector<32x128xbf16>,
    return
  }
  func.func @transform_0(%arg0: i32) -> (i32, i32) {
    %c0_i32 = arith.constant 0 : i32
    %c0_i32_0 = arith.constant 0 : i32
    return %arg0, %c0_i32 : i32, i32
  }
  func.func @transform_1(%arg0: i32) -> (i32, i32) {
    %c0_i32 = arith.constant 0 : i32
    %c0_i32_0 = arith.constant 0 : i32
    %c0_i32_1 = arith.constant 0 : i32
    return %c0_i32, %c0_i32_0 : i32, i32
  }
  func.func @transform_2(%arg0: i32) -> (i32, i32) {
    %c0_i32 = arith.constant 0 : i32
    %c0_i32_0 = arith.constant 0 : i32
    %c0_i32_1 = arith.constant 0 : i32
    return %c0_i32, %c0_i32_0 : i32, i32
  }
  func.func @transform_3(%arg0: i32) -> (i32, i32) {
    %c0_i32 = arith.constant 0 : i32
    %c0_i32_0 = arith.constant 0 : i32
    return %arg0, %c0_i32 : i32, i32
  }
}

module attributes {stable_mosaic.version = 11 : i64} {
  func.func @_conv_block_kernel(%arg0: i32, %arg1: memref<16x1152xbf16, #tpu.memory_space<vmem>>, %arg2: memref<1152x128xbf16, #tpu.memory_space<vmem>>, %arg3: memref<1x128xf32, #tpu.memory_space<vmem>>, %arg4: memref<16x128xbf16, #tpu.memory_space<vmem>>) attributes {dimension_semantics = [#tpu.dimension_semantics<parallel>], iteration_bounds = array<i64: 1>, scalar_prefetch = 0 : i64, scratch_operands = 0 : i64, tpu.core_type = #tpu.core_type<tc>, window_params = [{transform_indices = @transform_0, window_bounds = array<i64: 16, 1152>}, {pipeline_mode = #tpu.pipeline_mode<synchronous>, transform_indices = @transform_1, window_bounds = array<i64: 1152, 128>}, {pipeline_mode = #tpu.pipeline_mode<synchronous>, transform_indices = @transform_2, window_bounds = array<i64: 1, 128>}, {transform_indices = @transform_3, window_bounds = array<i64: 16, 128>}]} {
    %c0 = arith.constant 0 : index
    %c0_0 = arith.constant 0 : index
    %0 = vector.load %arg1[%c0, %c0_0] : memref<16x1152xbf16, #tpu.memory_space<vmem>>, vector<16x1152xbf16>
    %c0_1 = arith.constant 0 : index
    %c0_2 = arith.constant 0 : index
    %1 = vector.load %arg2[%c0_1, %c0_2] : memref<1152x128xbf16, #tpu.memory_space<vmem>>, vector<1152x128xbf16>
    %cst = arith.constant dense<0.000000e+00> : vector<16x128xf32>
    %2 = tpu.matmul %0, %1, %cst {dimension_numbers = #tpu.dot_dimension_numbers<[1], [0], [0], [1], [0, 0, 1, 1], [], []>} : vector<16x1152xbf16>, vector<1152x128xbf16>, vector<16x128xf32> -> vector<16x128xf32>
    %c0_3 = arith.constant 0 : index
    %c0_4 = arith.constant 0 : index
    %3 = vector.load %arg3[%c0_3, %c0_4] : memref<1x128xf32, #tpu.memory_space<vmem>>, vector<1x128xf32>
    %4 = vector.broadcast %3 : vector<1x128xf32> to vector<16x128xf32>
    %5 = arith.addf %2, %4 : vector<16x128xf32>
    %cst_5 = arith.constant 0.000000e+00 : f32
    %6 = vector.broadcast %cst_5 : f32 to vector<16x128xf32>
    %7 = arith.maximumf %5, %6 : vector<16x128xf32>
    %8 = arith.truncf %7 : vector<16x128xf32> to vector<16x128xbf16>
    %c0_6 = arith.constant 0 : index
    %c0_7 = arith.constant 0 : index
    %9 = vector.load %arg4[%c0_6, %c0_7] : memref<16x128xbf16, #tpu.memory_space<vmem>>, vector<16x128xbf16>
    tpu.vector_store %arg4[%c0_6, %c0_7], %8 {strides = array<i32>} : memref<16x128xbf16, #tpu.memory_space<vmem>>, vector<16x128xbf16>,
    return
  }
  func.func @transform_0(%arg0: i32) -> (i32, i32) {
    %c0_i32 = arith.constant 0 : i32
    %c0_i32_0 = arith.constant 0 : i32
    return %arg0, %c0_i32 : i32, i32
  }
  func.func @transform_1(%arg0: i32) -> (i32, i32) {
    %c0_i32 = arith.constant 0 : i32
    %c0_i32_0 = arith.constant 0 : i32
    %c0_i32_1 = arith.constant 0 : i32
    return %c0_i32, %c0_i32_0 : i32, i32
  }
  func.func @transform_2(%arg0: i32) -> (i32, i32) {
    %c0_i32 = arith.constant 0 : i32
    %c0_i32_0 = arith.constant 0 : i32
    %c0_i32_1 = arith.constant 0 : i32
    return %c0_i32, %c0_i32_0 : i32, i32
  }
  func.func @transform_3(%arg0: i32) -> (i32, i32) {
    %c0_i32 = arith.constant 0 : i32
    %c0_i32_0 = arith.constant 0 : i32
    return %arg0, %c0_i32 : i32, i32
  }
}

module attributes {stable_mosaic.version = 11 : i64} {
  func.func @_conv_block_kernel(%arg0: i32, %arg1: memref<16x576xbf16, #tpu.memory_space<vmem>>, %arg2: memref<576x128xbf16, #tpu.memory_space<vmem>>, %arg3: memref<1x128xf32, #tpu.memory_space<vmem>>, %arg4: memref<16x128xbf16, #tpu.memory_space<vmem>>) attributes {dimension_semantics = [#tpu.dimension_semantics<parallel>], iteration_bounds = array<i64: 1>, scalar_prefetch = 0 : i64, scratch_operands = 0 : i64, tpu.core_type = #tpu.core_type<tc>, window_params = [{transform_indices = @transform_0, window_bounds = array<i64: 16, 576>}, {pipeline_mode = #tpu.pipeline_mode<synchronous>, transform_indices = @transform_1, window_bounds = array<i64: 576, 128>}, {pipeline_mode = #tpu.pipeline_mode<synchronous>, transform_indices = @transform_2, window_bounds = array<i64: 1, 128>}, {transform_indices = @transform_3, window_bounds = array<i64: 16, 128>}]} {
    %c0 = arith.constant 0 : index
    %c0_0 = arith.constant 0 : index
    %0 = vector.load %arg1[%c0, %c0_0] : memref<16x576xbf16, #tpu.memory_space<vmem>>, vector<16x576xbf16>
    %c0_1 = arith.constant 0 : index
    %c0_2 = arith.constant 0 : index
    %1 = vector.load %arg2[%c0_1, %c0_2] : memref<576x128xbf16, #tpu.memory_space<vmem>>, vector<576x128xbf16>
    %cst = arith.constant dense<0.000000e+00> : vector<16x128xf32>
    %2 = tpu.matmul %0, %1, %cst {dimension_numbers = #tpu.dot_dimension_numbers<[1], [0], [0], [1], [0, 0, 1, 1], [], []>} : vector<16x576xbf16>, vector<576x128xbf16>, vector<16x128xf32> -> vector<16x128xf32>
    %c0_3 = arith.constant 0 : index
    %c0_4 = arith.constant 0 : index
    %3 = vector.load %arg3[%c0_3, %c0_4] : memref<1x128xf32, #tpu.memory_space<vmem>>, vector<1x128xf32>
    %4 = vector.broadcast %3 : vector<1x128xf32> to vector<16x128xf32>
    %5 = arith.addf %2, %4 : vector<16x128xf32>
    %cst_5 = arith.constant 0.000000e+00 : f32
    %6 = vector.broadcast %cst_5 : f32 to vector<16x128xf32>
    %7 = arith.maximumf %5, %6 : vector<16x128xf32>
    %8 = arith.truncf %7 : vector<16x128xf32> to vector<16x128xbf16>
    %c0_6 = arith.constant 0 : index
    %c0_7 = arith.constant 0 : index
    %9 = vector.load %arg4[%c0_6, %c0_7] : memref<16x128xbf16, #tpu.memory_space<vmem>>, vector<16x128xbf16>
    tpu.vector_store %arg4[%c0_6, %c0_7], %8 {strides = array<i32>} : memref<16x128xbf16, #tpu.memory_space<vmem>>, vector<16x128xbf16>,
    return
  }
  func.func @transform_0(%arg0: i32) -> (i32, i32) {
    %c0_i32 = arith.constant 0 : i32
    %c0_i32_0 = arith.constant 0 : i32
    return %arg0, %c0_i32 : i32, i32
  }
  func.func @transform_1(%arg0: i32) -> (i32, i32) {
    %c0_i32 = arith.constant 0 : i32
    %c0_i32_0 = arith.constant 0 : i32
    %c0_i32_1 = arith.constant 0 : i32
    return %c0_i32, %c0_i32_0 : i32, i32
  }
  func.func @transform_2(%arg0: i32) -> (i32, i32) {
    %c0_i32 = arith.constant 0 : i32
    %c0_i32_0 = arith.constant 0 : i32
    %c0_i32_1 = arith.constant 0 : i32
    return %c0_i32, %c0_i32_0 : i32, i32
  }
  func.func @transform_3(%arg0: i32) -> (i32, i32) {
    %c0_i32 = arith.constant 0 : i32
    %c0_i32_0 = arith.constant 0 : i32
    return %arg0, %c0_i32 : i32, i32
  }
}

</mosaic_0001>

<llo_original>
// kernel: mul.4
$region0: #{mul.4}
  %s0 = inlined_call_operand.vmem [shape: f32[3,3,16], index: 0, kind: input, shape index: {}]
  %s1 = inlined_call_operand.vmem [shape: f32[9,16], index: 1, kind: output, shape index: {}]
  $region1: #{mul.4} parent=0
    #allocation0 [shape = 'u8[12288]{0}', space=vmem, size = 0x3000, scoped, tag = 'scoped mem for input reshape']
    %s3 = sshllo.u32 0, 4
    %s4 = smul.addr 4, 2
    %s5 = scalar_lea.vmem %s0, %s4
    %v6 = vld [vmem:[%s5] sm:%s3]
    %s7 = scalar_lea.vmem [#allocation0], 16
    %8 = vst [vmem:[%s7] sm:%s3] %v6
    %s9 = scalar_lea.vmem %s0, 4
    %v10 = vld [vmem:[%s9] sm:%s3]
    %s11 = scalar_lea.vmem [#allocation0], 8
    %12 = vst [vmem:[%s11] sm:%s3] %v10
    %v13 = vld [vmem:[%s0] sm:%s3]
    %14 = vst [vmem:[#allocation0] sm:%s3] %v13
    %v15 = vld [vmem:[#allocation0] sm:$0x7]
    %vm16 = vcmask 130048
    %17 = vst.msk [vmem:[%s1] sm:$0x7] %vm16, %v15
    %s18 = scalar_lea.vmem [#allocation0], 8
    %v19 = vld [vmem:[%s18] sm:$0x7]
    %vm20 = vcmask 130048
    %s21 = scalar_lea.vmem %s1, 3
    %22 = vst.msk [vmem:[%s21] sm:$0x7] %vm20, %v19
    %s23 = scalar_lea.vmem [#allocation0], 16
    %v24 = vld [vmem:[%s23] sm:$0x7]
    %vm25 = vcmask 130048
    %s26 = scalar_lea.vmem %s1, 6
    %27 = vst.msk [vmem:[%s26] sm:$0x7] %vm25, %v24

// kernel: convnet_forward.4
$region0: #{convnet_forward.4}
  #allocation0 [shape = 'u32[]', space=smem, size = 0x4, offset = 0x4, fixed_abs, tag = 'smem constant byte address 0x4 - core index']
  #allocation1 [shape = 'u32[144,128]{1,0:T(1,128)}', space=vmem, size = 0x12000, scoped, tag = 'internal scratch']
  %s0 = inlined_call_operand.vmem [shape: bf16[64,72], index: 0, kind: input, shape index: {}]
  %s1 = inlined_call_operand.vmem [shape: bf16[72,128], index: 1, kind: input, shape index: {}]
  %s2 = inlined_call_operand.vmem [shape: f32[1,128], index: 2, kind: input, shape index: {}]
  %s3 = inlined_call_operand.vmem [shape: bf16[64,128], index: 3, kind: output, shape index: {}]
  %s4 = sld [smem:[#allocation0]]
  $region45: #{convnet_forward.4} parent=0
    _
  %s6 = ssub.s32 1, %s4
  %s7 = scalar_select 0, %s6, %s4
  loop: start=0, step=1, limit=4
  $region2: #{convnet_forward.4} parent=0 // loop_pre_header
    _
  $region3: #{convnet_forward.4} parent=0 // loop_header
    %s9 = sphi 0, %s13
    %p10 = scmp.ge.s32.totalorder %s9, 4
    %s19 = sphi 0, %s21
    %s22 = sphi 0, %s19
    %s23 = sphi 0, %s22
    %s39 = sphi 0, %s23
    %s43 = sphi 0, %s43
    %s45 = sphi 0, %s43
    %s46 = sphi 0, %s45
    %s60 = sphi 0, %s46
    %s64 = sphi 0, %s64
    %s66 = sphi 0, %s64
    %s67 = sphi 0, %s66
    %s81 = sphi 0, %s67
    %s87 = sphi 0, %s89
    %s90 = sphi 0, %s87
    %s91 = sphi 0, %s90
    %s107 = sphi 0, %s91
  $region4: #{convnet_forward.4} parent=0 // loop_header_branch
    %12 = sbr.rel (%p10) target = $region8
  $region5: #{convnet_forward.4} parent=0 // loop_body
    %s14 = ssub.s32 %s9, 1
    %s15 = ssub.s32 %s9, 2
    %s16 = sadd.s32 %s9, 1
    %s17 = ssub.s32 %s9, %s16
    %p18 = scmp.eq.s32.totalorder %s17, 0
    %s20 = sadd.s32 %s19, 1
    %s21 = scalar_select %p18, %s19, %s20
    %p24 = pneg %p18
    %p25 = scmp.eq.s32.totalorder %s9, 1
    %p26 = por %p24, %p25
    %p27 = scmp.ne.s32.totalorder %s19, %s22
    %p28 = scmp.eq.s32.totalorder %s9, 0
    %p29 = por %p27, %p28
    %p30 = scmp.ne.s32.totalorder %s19, %s22
    %p31 = scmp.eq.s32.totalorder %s14, 1
    %p32 = por %p30, %p31
    %p33 = scmp.ne.s32.totalorder %s22, %s23
    %p34 = scmp.eq.s32.totalorder %s14, 0
    %p35 = por %p33, %p34
    %p36 = scmp.ne.s32.totalorder %s22, %s23
    %p37 = scmp.eq.s32.totalorder %s15, 1
    %p38 = por %p36, %p37
    %p40 = scmp.ne.s32.totalorder %s23, %s39
    %p41 = scmp.eq.s32.totalorder %s15, 0
    %p42 = por %p40, %p41
    %s44 = sadd.s32 %s43, 1
    %p47 = scmp.eq.s32.totalorder %s9, 1
    %p48 = scmp.ne.s32.totalorder %s43, %s45
    %p49 = scmp.eq.s32.totalorder %s9, 0
    %p50 = por %p48, %p49
    %p51 = scmp.ne.s32.totalorder %s43, %s45
    %p52 = scmp.eq.s32.totalorder %s14, 1
    %p53 = por %p51, %p52
    %p54 = scmp.ne.s32.totalorder %s45, %s46
    %p55 = scmp.eq.s32.totalorder %s14, 0
    %p56 = por %p54, %p55
    %p57 = scmp.ne.s32.totalorder %s45, %s46
    %p58 = scmp.eq.s32.totalorder %s15, 1
    %p59 = por %p57, %p58
    %p61 = scmp.ne.s32.totalorder %s46, %s60
    %p62 = scmp.eq.s32.totalorder %s15, 0
    %p63 = por %p61, %p62
    %s65 = sadd.s32 %s64, 1
    %p68 = scmp.eq.s32.totalorder %s9, 1
    %p69 = scmp.ne.s32.totalorder %s64, %s66
    %p70 = scmp.eq.s32.totalorder %s9, 0
    %p71 = por %p69, %p70
    %p72 = scmp.ne.s32.totalorder %s64, %s66
    %p73 = scmp.eq.s32.totalorder %s14, 1
    %p74 = por %p72, %p73
    %p75 = scmp.ne.s32.totalorder %s66, %s67
    %p76 = scmp.eq.s32.totalorder %s14, 0
    %p77 = por %p75, %p76
    %p78 = scmp.ne.s32.totalorder %s66, %s67
    %p79 = scmp.eq.s32.totalorder %s15, 1
    %p80 = por %p78, %p79
    %p82 = scmp.ne.s32.totalorder %s67, %s81
    %p83 = scmp.eq.s32.totalorder %s15, 0
    %p84 = por %p82, %p83
    %s85 = ssub.s32 %s9, %s16
    %p86 = scmp.eq.s32.totalorder %s85, 0
    %s88 = sadd.s32 %s87, 1
    %s89 = scalar_select %p86, %s87, %s88
    %p92 = pneg %p86
    %p93 = scmp.eq.s32.totalorder %s9, 1
    %p94 = por %p92, %p93
    %p95 = scmp.ne.s32.totalorder %s87, %s90
    %p96 = scmp.eq.s32.totalorder %s9, 0
    %p97 = por %p95, %p96
    %p98 = scmp.ne.s32.totalorder %s87, %s90
    %p99 = scmp.eq.s32.totalorder %s14, 1
    %p100 = por %p98, %p99
    %p101 = scmp.ne.s32.totalorder %s90, %s91
    %p102 = scmp.eq.s32.totalorder %s14, 0
    %p103 = por %p101, %p102
    %p104 = scmp.ne.s32.totalorder %s90, %s91
    %p105 = scmp.eq.s32.totalorder %s15, 1
    %p106 = por %p104, %p105
    %p108 = scmp.ne.s32.totalorder %s91, %s107
    %p109 = scmp.eq.s32.totalorder %s15, 0
    %p110 = por %p108, %p109
    %p111 = scmp.le.s32.totalorder 1, %s9
    %p112 = scmp.lt.s32.totalorder %s9, 3
    %p113 = pnand %p111, %p112
    %p114 = pneg %p113
    // Predicated region
    $region9: #{convnet_forward.4} parent=5 // pred_check
      _
    $region10: #{convnet_forward.4} parent=5 // pred_check_branch
      %116 = sbr.rel (%p113) target = $region12
    $region11: #{convnet_forward.4} parent=5 // pred_region
      %s117 = ssub.s32 %s9, 1
      // Predicated region
      $region13: #{convnet_forward.4} parent=11 // pred_check
        %p118 = pneg %p56
      $region14: #{convnet_forward.4} parent=11 // pred_check_branch
        %120 = sbr.rel (%p118) target = $region16
      $region15: #{convnet_forward.4} parent=11 // pred_region
        _
      $region16: #{convnet_forward.4} parent=11 // pred_fallthru
        _
      // Predicated region
      $region17: #{convnet_forward.4} parent=11 // pred_check
        %p121 = pneg %p77
      $region18: #{convnet_forward.4} parent=11 // pred_check_branch
        %123 = sbr.rel (%p121) target = $region20
      $region19: #{convnet_forward.4} parent=11 // pred_region
        _
      $region20: #{convnet_forward.4} parent=11 // pred_fallthru
        _
    $region12: #{convnet_forward.4} parent=5 // pred_fallthru
      _
    %p124 = scmp.lt.s32.totalorder %s9, 2
    // Predicated region
    $region21: #{convnet_forward.4} parent=5 // pred_check
      %p125 = pneg %p124
    $region22: #{convnet_forward.4} parent=5 // pred_check_branch
      %127 = sbr.rel (%p125) target = $region24
    $region23: #{convnet_forward.4} parent=5 // pred_region
      // Predicated region
      $region25: #{convnet_forward.4} parent=23 // pred_check
        %p128 = pneg %p29
      $region26: #{convnet_forward.4} parent=23 // pred_check_branch
        %130 = sbr.rel (%p128) target = $region28
      $region27: #{convnet_forward.4} parent=23 // pred_region
        %s131 = smul.u32 4, %s9
        %p132 = scmp.lt.s32.totalorder %s131, 7
        %s133 = scalar_select %p132, %s131, 7
        %s134 = smul.addr %s133, 4
        %s135 = scalar_lea.vmem %s0, %s134
        %s136 = smul.u32 4, %s9
      $region28: #{convnet_forward.4} parent=23 // pred_fallthru
        _
    $region24: #{convnet_forward.4} parent=5 // pred_fallthru
      _
    %p137 = scmp.le.s32.totalorder 1, %s9
    %p138 = scmp.lt.s32.totalorder %s9, 3
    %p139 = pnand %p137, %p138
    %p140 = pneg %p139
    // Predicated region
    $region29: #{convnet_forward.4} parent=5 // pred_check
      _
    $region30: #{convnet_forward.4} parent=5 // pred_check_branch
      %142 = sbr.rel (%p139) target = $region32
    $region31: #{convnet_forward.4} parent=5 // pred_region
      %s143 = ssub.s32 %s9, 1
      %s144 = smul.u32 4, %s14
      %p145 = scmp.lt.s32.totalorder %s144, 7
      %s146 = scalar_select %p145, %s144, 7
      %s147 = smul.addr %s146, 4
      %s148 = scalar_lea.vmem %s0, %s147
      %p149 = pneg %p35
      %p150 = pneg %p32
      %p151 = pneg %p56
      %p152 = pneg %p53
      %p153 = pneg %p77
      %p154 = pneg %p74
      %p155 = pneg %p103
      %p156 = pneg %p100
      %s157 = smul.u32 4, %s14
      %p158 = scmp.lt.s32.totalorder %s157, 7
      %s159 = scalar_select %p158, %s157, 7
      %s160 = smul.addr %s159, 4
      %s161 = scalar_lea.vmem %s3, %s160
      %s162 = smul.u32 4, %s14
      %p163 = scmp.lt.s32.totalorder %s162, 7
      %s164 = scalar_select %p163, %s162, 7
      %s165 = smul.addr %s164, 4
      %s166 = scalar_lea.vmem %s0, %s165
      %s167 = smul.u32 4, %s14
      %s168 = smul.u32 4, %s14
      %p169 = scmp.lt.s32.totalorder %s168, 7
      %s170 = scalar_select %p169, %s168, 7
      %s171 = smul.addr %s170, 4
      %s172 = scalar_lea.vmem %s3, %s171
      %s173 = smul.u32 4, %s14
      %v175 = vld [vmem:[%s166] sm:$0xf]
      %v176 = vld [vmem:[%s166 + $0x4] sm:$0xf]
      %v177 = vld [vmem:[%s166 + $0x8] sm:$0xf]
      %v178 = vld [vmem:[%s166 + $0xc] sm:$0xf]
      %v179 = vld [vmem:[%s1] sm:$0xf]
      %v180 = vld [vmem:[%s1 + $0x4] sm:$0xf]
      %v181 = vld [vmem:[%s1 + $0x8] sm:$0xf]
      %v182 = vld [vmem:[%s1 + $0xc] sm:$0xf]
      %v183 = vld [vmem:[%s1 + $0x10] sm:$0xf]
      %v184 = vld [vmem:[%s1 + $0x14] sm:$0xf]
      %v185 = vld [vmem:[%s1 + $0x18] sm:$0xf]
      %v186 = vld [vmem:[%s1 + $0x1c] sm:$0xf]
      %v187 = vld [vmem:[%s1 + $0x20] sm:$0xf]
      %v188 = vld [vmem:[%s2] sm:$0x1]
      %v190 = vlaneseq
      %v191 = vshrl.u32 %v190, 7
      %v192 = vsub.s32 0, %v191
      %v193 = vrot.slane %v188, %v192
      %v199 = vunpack.c.l.b16 %v175
      %v200 = vunpack.c.l.b16 %v176
      %v201 = vunpack.c.l.b16 %v177
      %v202 = vunpack.c.l.b16 %v178
      %v203 = vpack.c.b16 %v200, %v199
      %v204 = vpack.c.b16 %v202, %v201
      %v214 = vunpack.c.l.b16 %v179
      %v215 = vunpack.c.l.b16 %v180
      %v216 = vunpack.c.l.b16 %v181
      %v217 = vunpack.c.l.b16 %v182
      %v218 = vunpack.c.l.b16 %v183
      %v219 = vunpack.c.l.b16 %v184
      %v220 = vunpack.c.l.b16 %v185
      %v221 = vunpack.c.l.b16 %v186
      %v222 = vunpack.c.l.b16 %v187
      %v223 = vpack.c.b16 %v215, %v214
      %v224 = vpack.c.b16 %v217, %v216
      %v225 = vpack.c.b16 %v219, %v218
      %v226 = vpack.c.b16 %v221, %v220
      %v227 = vpack.c.b16 %v222, %v222
      %vm232 = vcmask 588800
      %v234 = vsel %vm232, %v203, 0
      %v237 = vsel %vm232, %v204, 0
      %vm239 = vcmask 1043456
      %v241 = vsel %vm239, %v227, 0
      %243 = vmatprep.subr.bf16.mxu0 0
      %244 = vmatpush1.bf16.msra.mxu0 %v223
      %245 = vmatprep.subr.bf16.mxu0 0
      %246 = vmatpush1.bf16.msra.mxu0 %v224
      %247 = vmatprep.subr.bf16.mxu0 0
      %248 = vmatpush1.bf16.msra.mxu0 %v225
      %249 = vmatprep.subr.bf16.mxu0 0
      %250 = vmatpush1.bf16.msra.mxu0 %v226
      %251 = vmatprep.subr.bf16.mxu0 0
      %252 = vmatpush1.bf16.msra.mxu0 %v241
      %253 = vmatprep.subr.bf16.mxu0 0
      %254 = vmatpush1.bf16.msra.mxu0 0
      %255 = vmatprep.subr.bf16.mxu0 0
      %256 = vmatpush1.bf16.msra.mxu0 0
      %257 = vmatprep.subr.bf16.mxu0 0
      %258 = vmatpush1.bf16.msra.mxu0 0
      %259 = vmatprep.subr.bf16.mxu0 0
      %260 = vmatpush1.bf16.msra.mxu0 0
      %261 = vmatprep.subr.bf16.mxu0 0
      %262 = vmatpush1.bf16.msra.mxu0 0
      %263 = vmatprep.subr.bf16.mxu0 0
      %264 = vmatpush1.bf16.msra.mxu0 0
      %265 = vmatprep.subr.bf16.mxu0 0
      %266 = vmatpush1.bf16.msra.mxu0 0
      %267 = vmatprep.subr.bf16.mxu0 0
      %268 = vmatpush1.bf16.msra.mxu0 0
      %269 = vmatprep.subr.bf16.mxu0 0
      %270 = vmatpush1.bf16.msra.mxu0 0
      %271 = vmatprep.subr.bf16.mxu0 0
      %272 = vmatpush1.bf16.msra.mxu0 0
      %273 = vmatprep.subr.bf16.mxu0 0
      %274 = vmatpush1.bf16.msra.mxu0 0
      %275 = vmatprep.mubr.bf16.mxu0 0
      %276 = vmatmul.mubr.bf16.gmra.mrb[0].mxu0 %v234
      %v277 = vpop.f32.mrb[0].mxu0
      %v278 = vadd.f32 %v193, %v277
      %v279 = vpop.f32.mrb[0].mxu0
      %v280 = vpop.f32.mrb[0].mxu0
      %v281 = vadd.f32 %v193, %v280
      %v282 = vpop.f32.mrb[0].mxu0
      %283 = vmatprep.mubr.bf16.mxu0 0
      %284 = vmatmul.mubr.bf16.gmra.mrb[0].mxu0 %v237
      %v285 = vpop.f32.mrb[0].mxu0
      %v286 = vadd.f32 %v193, %v285
      %v287 = vpop.f32.mrb[0].mxu0
      %v288 = vpop.f32.mrb[0].mxu0
      %v289 = vadd.f32 %v193, %v288
      %v290 = vpop.f32.mrb[0].mxu0
      %291 = vdwg.mxu0
      %v292 = vmax.f32 %v278, 0.0
      %v293 = vmax.f32 %v281, 0.0
      %v294 = vmax.f32 %v286, 0.0
      %v295 = vmax.f32 %v289, 0.0
      %v296 = vpack.c.bf16 %v293, %v292
      %v297 = vpack.c.bf16 %v295, %v294
      %v300 = vunpack.c.l.b16 %v296
      %v301 = vunpack.c.h.b16 %v296
      %v302 = vunpack.c.l.b16 %v297
      %v303 = vunpack.c.h.b16 %v297
      %v304 = vpack.c.b16 %v300, %v300
      %v305 = vpack.c.b16 %v301, %v301
      %v306 = vpack.c.b16 %v302, %v302
      %v307 = vpack.c.b16 %v303, %v303
      %312 = vst [vmem:[%s172] sm:$0xf] %v304
      %313 = vst [vmem:[%s172 + $0x4] sm:$0xf] %v305
      %314 = vst [vmem:[%s172 + $0x8] sm:$0xf] %v306
      %315 = vst [vmem:[%s172 + $0xc] sm:$0xf] %v307
      %s316 = smul.u32 4, %s14
      %p317 = scmp.lt.s32.totalorder %s316, 7
      %s318 = scalar_select %p317, %s316, 7
      %s319 = smul.addr %s318, 4
      %s320 = scalar_lea.vmem %s3, %s319
      // Predicated region
      $region33: #{convnet_forward.4} parent=31 // pred_check
        %p321 = pneg %p100
      $region34: #{convnet_forward.4} parent=31 // pred_check_branch
        %323 = sbr.rel (%p321) target = $region36
      $region35: #{convnet_forward.4} parent=31 // pred_region
        %s324 = smul.u32 4, %s14
      $region36: #{convnet_forward.4} parent=31 // pred_fallthru
        _
    $region32: #{convnet_forward.4} parent=5 // pred_fallthru
      _
    %p325 = scmp.le.s32.totalorder 2, %s9
    // Predicated region
    $region37: #{convnet_forward.4} parent=5 // pred_check
      %p326 = pneg %p325
    $region38: #{convnet_forward.4} parent=5 // pred_check_branch
      %328 = sbr.rel (%p326) target = $region40
    $region39: #{convnet_forward.4} parent=5 // pred_region
      %s329 = ssub.s32 %s9, 2
      // Predicated region
      $region41: #{convnet_forward.4} parent=39 // pred_check
        %p330 = pneg %p106
      $region42: #{convnet_forward.4} parent=39 // pred_check_branch
        %332 = sbr.rel (%p330) target = $region44
      $region43: #{convnet_forward.4} parent=39 // pred_region
        %s333 = smul.u32 4, %s15
        %p334 = scmp.lt.s32.totalorder %s333, 7
        %s335 = scalar_select %p334, %s333, 7
        %s336 = smul.addr %s335, 4
        %s337 = scalar_lea.vmem %s3, %s336
      $region44: #{convnet_forward.4} parent=39 // pred_fallthru
        _
    $region40: #{convnet_forward.4} parent=5 // pred_fallthru
      _
  $region6: #{convnet_forward.4} parent=0 // loop_footer
    %s13 = sadd.s32 1, %s9
  $region7: #{convnet_forward.4} parent=0 // loop_footer_branch
    %8 = sbr.rel target = $region3
  $region8: #{convnet_forward.4} parent=0 // loop_exit
    _

// kernel: convnet_forward.5
$region0: #{convnet_forward.5}
  #allocation0 [shape = 'u32[]', space=smem, size = 0x4, offset = 0x4, fixed_abs, tag = 'smem constant byte address 0x4 - core index']
  #allocation1 [shape = 'u32[144,128]{1,0:T(1,128)}', space=vmem, size = 0x12000, scoped, tag = 'internal scratch']
  %s0 = inlined_call_operand.vmem [shape: bf16[16,1152], index: 0, kind: input, shape index: {}]
  %s1 = inlined_call_operand.vmem [shape: bf16[1152,128], index: 1, kind: input, shape index: {}]
  %s2 = inlined_call_operand.vmem [shape: f32[1,128], index: 2, kind: input, shape index: {}]
  %s3 = inlined_call_operand.vmem [shape: bf16[16,128], index: 3, kind: output, shape index: {}]
  %s4 = sld [smem:[#allocation0]]
  $region22: #{convnet_forward.5} parent=0
    _
  %s6 = ssub.s32 1, %s4
  %s7 = scalar_select 0, %s6, %s4
  // Predicated region
  $region2: #{convnet_forward.5} parent=0 // pred_check
    _
  $region3: #{convnet_forward.5} parent=0 // pred_check_branch
    %9 = sbr.rel (0) target = $region5
  $region4: #{convnet_forward.5} parent=0 // pred_region
    _
  $region5: #{convnet_forward.5} parent=0 // pred_fallthru
    _
  // Predicated region
  $region6: #{convnet_forward.5} parent=0 // pred_check
    _
  $region7: #{convnet_forward.5} parent=0 // pred_check_branch
    %11 = sbr.rel (0) target = $region9
  $region8: #{convnet_forward.5} parent=0 // pred_region
    _
  $region9: #{convnet_forward.5} parent=0 // pred_fallthru
    _
  // Predicated region
  $region10: #{convnet_forward.5} parent=0 // pred_check
    _
  $region11: #{convnet_forward.5} parent=0 // pred_check_branch
    %13 = sbr.rel (0) target = $region13
  $region12: #{convnet_forward.5} parent=0 // pred_region
    _
  $region13: #{convnet_forward.5} parent=0 // pred_fallthru
    _
  %v15 = vld [vmem:[%s0] sm:$0xff]
  %v16 = vld [vmem:[%s0 + $0x8] sm:$0xff]
  %v17 = vld [vmem:[%s0 + $0x10] sm:$0xff]
  %v18 = vld [vmem:[%s0 + $0x18] sm:$0xff]
  %v19 = vld [vmem:[%s0 + $0x20] sm:$0xf]
  %v20 = vld [vmem:[%s0 + $0x24] sm:$0xff]
  %v21 = vld [vmem:[%s0 + $0x2c] sm:$0xff]
  %v22 = vld [vmem:[%s0 + $0x34] sm:$0xff]
  %v23 = vld [vmem:[%s0 + $0x3c] sm:$0xff]
  %v24 = vld [vmem:[%s0 + $0x44] sm:$0xf]
  %v25 = vld [vmem:[%s1] sm:$0xf]
  %v26 = vld [vmem:[%s1 + $0x4] sm:$0xf]
  %v27 = vld [vmem:[%s1 + $0x8] sm:$0xf]
  %v28 = vld [vmem:[%s1 + $0xc] sm:$0xf]
  %v29 = vld [vmem:[%s1 + $0x10] sm:$0xf]
  %v30 = vld [vmem:[%s1 + $0x14] sm:$0xf]
  %v31 = vld [vmem:[%s1 + $0x18] sm:$0xf]
  %v32 = vld [vmem:[%s1 + $0x1c] sm:$0xf]
  %v33 = vld [vmem:[%s1 + $0x20] sm:$0xf]
  %v34 = vld [vmem:[%s1 + $0x24] sm:$0xf]
  %v35 = vld [vmem:[%s1 + $0x28] sm:$0xf]
  %v36 = vld [vmem:[%s1 + $0x2c] sm:$0xf]
  %v37 = vld [vmem:[%s1 + $0x30] sm:$0xf]
  %v38 = vld [vmem:[%s1 + $0x34] sm:$0xf]
  %v39 = vld [vmem:[%s1 + $0x38] sm:$0xf]
  %v40 = vld [vmem:[%s1 + $0x3c] sm:$0xf]
  %v41 = vld [vmem:[%s1 + $0x40] sm:$0xf]
  %v42 = vld [vmem:[%s1 + $0x44] sm:$0xf]
  %v43 = vld [vmem:[%s1 + $0x48] sm:$0xf]
  %v44 = vld [vmem:[%s1 + $0x4c] sm:$0xf]
  %v45 = vld [vmem:[%s1 + $0x50] sm:$0xf]
  %v46 = vld [vmem:[%s1 + $0x54] sm:$0xf]
  %v47 = vld [vmem:[%s1 + $0x58] sm:$0xf]
  %v48 = vld [vmem:[%s1 + $0x5c] sm:$0xf]
  %v49 = vld [vmem:[%s1 + $0x60] sm:$0xf]
  %v50 = vld [vmem:[%s1 + $0x64] sm:$0xf]
  %v51 = vld [vmem:[%s1 + $0x68] sm:$0xf]
  %v52 = vld [vmem:[%s1 + $0x6c] sm:$0xf]
  %v53 = vld [vmem:[%s1 + $0x70] sm:$0xf]
  %v54 = vld [vmem:[%s1 + $0x74] sm:$0xf]
  %v55 = vld [vmem:[%s1 + $0x78] sm:$0xf]
  %v56 = vld [vmem:[%s1 + $0x7c] sm:$0xf]
  %v57 = vld [vmem:[%s1 + $0x80] sm:$0xf]
  %v58 = vld [vmem:[%s1 + $0x84] sm:$0xf]
  %v59 = vld [vmem:[%s1 + $0x88] sm:$0xf]
  %v60 = vld [vmem:[%s1 + $0x8c] sm:$0xf]
  %v61 = vld [vmem:[%s1 + $0x90] sm:$0xf]
  %v62 = vld [vmem:[%s1 + $0x94] sm:$0xf]
  %v63 = vld [vmem:[%s1 + $0x98] sm:$0xf]
  %v64 = vld [vmem:[%s1 + $0x9c] sm:$0xf]
  %v65 = vld [vmem:[%s1 + $0xa0] sm:$0xf]
  %v66 = vld [vmem:[%s1 + $0xa4] sm:$0xf]
  %v67 = vld [vmem:[%s1 + $0xa8] sm:$0xf]
  %v68 = vld [vmem:[%s1 + $0xac] sm:$0xf]
  %v69 = vld [vmem:[%s1 + $0xb0] sm:$0xf]
  %v70 = vld [vmem:[%s1 + $0xb4] sm:$0xf]
  %v71 = vld [vmem:[%s1 + $0xb8] sm:$0xf]
  %v72 = vld [vmem:[%s1 + $0xbc] sm:$0xf]
  %v73 = vld [vmem:[%s1 + $0xc0] sm:$0xf]
  %v74 = vld [vmem:[%s1 + $0xc4] sm:$0xf]
  %v75 = vld [vmem:[%s1 + $0xc8] sm:$0xf]
  %v76 = vld [vmem:[%s1 + $0xcc] sm:$0xf]
  %v77 = vld [vmem:[%s1 + $0xd0] sm:$0xf]
  %v78 = vld [vmem:[%s1 + $0xd4] sm:$0xf]
  %v79 = vld [vmem:[%s1 + $0xd8] sm:$0xf]
  %v80 = vld [vmem:[%s1 + $0xdc] sm:$0xf]
  %v81 = vld [vmem:[%s1 + $0xe0] sm:$0xf]
  %v82 = vld [vmem:[%s1 + $0xe4] sm:$0xf]
  %v83 = vld [vmem:[%s1 + $0xe8] sm:$0xf]
  %v84 = vld [vmem:[%s1 + $0xec] sm:$0xf]
  %v85 = vld [vmem:[%s1 + $0xf0] sm:$0xf]
  %v86 = vld [vmem:[%s1 + $0xf4] sm:$0xf]
  %v87 = vld [vmem:[%s1 + $0xf8] sm:$0xf]
  %v88 = vld [vmem:[%s1 + $0xfc] sm:$0xf]
  %v89 = vld [vmem:[%s1 + $0x100] sm:$0xf]
  %v90 = vld [vmem:[%s1 + $0x104] sm:$0xf]
  %v91 = vld [vmem:[%s1 + $0x108] sm:$0xf]
  %v92 = vld [vmem:[%s1 + $0x10c] sm:$0xf]
  %v93 = vld [vmem:[%s1 + $0x110] sm:$0xf]
  %v94 = vld [vmem:[%s1 + $0x114] sm:$0xf]
  %v95 = vld [vmem:[%s1 + $0x118] sm:$0xf]
  %v96 = vld [vmem:[%s1 + $0x11c] sm:$0xf]
  %v97 = vld [vmem:[%s1 + $0x120] sm:$0xf]
  %v98 = vld [vmem:[%s1 + $0x124] sm:$0xf]
  %v99 = vld [vmem:[%s1 + $0x128] sm:$0xf]
  %v100 = vld [vmem:[%s1 + $0x12c] sm:$0xf]
  %v101 = vld [vmem:[%s1 + $0x130] sm:$0xf]
  %v102 = vld [vmem:[%s1 + $0x134] sm:$0xf]
  %v103 = vld [vmem:[%s1 + $0x138] sm:$0xf]
  %v104 = vld [vmem:[%s1 + $0x13c] sm:$0xf]
  %v105 = vld [vmem:[%s1 + $0x140] sm:$0xf]
  %v106 = vld [vmem:[%s1 + $0x144] sm:$0xf]
  %v107 = vld [vmem:[%s1 + $0x148] sm:$0xf]
  %v108 = vld [vmem:[%s1 + $0x14c] sm:$0xf]
  %v109 = vld [vmem:[%s1 + $0x150] sm:$0xf]
  %v110 = vld [vmem:[%s1 + $0x154] sm:$0xf]
  %v111 = vld [vmem:[%s1 + $0x158] sm:$0xf]
  %v112 = vld [vmem:[%s1 + $0x15c] sm:$0xf]
  %v113 = vld [vmem:[%s1 + $0x160] sm:$0xf]
  %v114 = vld [vmem:[%s1 + $0x164] sm:$0xf]
  %v115 = vld [vmem:[%s1 + $0x168] sm:$0xf]
  %v116 = vld [vmem:[%s1 + $0x16c] sm:$0xf]
  %v117 = vld [vmem:[%s1 + $0x170] sm:$0xf]
  %v118 = vld [vmem:[%s1 + $0x174] sm:$0xf]
  %v119 = vld [vmem:[%s1 + $0x178] sm:$0xf]
  %v120 = vld [vmem:[%s1 + $0x17c] sm:$0xf]
  %v121 = vld [vmem:[%s1 + $0x180] sm:$0xf]
  %v122 = vld [vmem:[%s1 + $0x184] sm:$0xf]
  %v123 = vld [vmem:[%s1 + $0x188] sm:$0xf]
  %v124 = vld [vmem:[%s1 + $0x18c] sm:$0xf]
  %v125 = vld [vmem:[%s1 + $0x190] sm:$0xf]
  %v126 = vld [vmem:[%s1 + $0x194] sm:$0xf]
  %v127 = vld [vmem:[%s1 + $0x198] sm:$0xf]
  %v128 = vld [vmem:[%s1 + $0x19c] sm:$0xf]
  %v129 = vld [vmem:[%s1 + $0x1a0] sm:$0xf]
  %v130 = vld [vmem:[%s1 + $0x1a4] sm:$0xf]
  %v131 = vld [vmem:[%s1 + $0x1a8] sm:$0xf]
  %v132 = vld [vmem:[%s1 + $0x1ac] sm:$0xf]
  %v133 = vld [vmem:[%s1 + $0x1b0] sm:$0xf]
  %v134 = vld [vmem:[%s1 + $0x1b4] sm:$0xf]
  %v135 = vld [vmem:[%s1 + $0x1b8] sm:$0xf]
  %v136 = vld [vmem:[%s1 + $0x1bc] sm:$0xf]
  %v137 = vld [vmem:[%s1 + $0x1c0] sm:$0xf]
  %v138 = vld [vmem:[%s1 + $0x1c4] sm:$0xf]
  %v139 = vld [vmem:[%s1 + $0x1c8] sm:$0xf]
  %v140 = vld [vmem:[%s1 + $0x1cc] sm:$0xf]
  %v141 = vld [vmem:[%s1 + $0x1d0] sm:$0xf]
  %v142 = vld [vmem:[%s1 + $0x1d4] sm:$0xf]
  %v143 = vld [vmem:[%s1 + $0x1d8] sm:$0xf]
  %v144 = vld [vmem:[%s1 + $0x1dc] sm:$0xf]
  %v145 = vld [vmem:[%s1 + $0x1e0] sm:$0xf]
  %v146 = vld [vmem:[%s1 + $0x1e4] sm:$0xf]
  %v147 = vld [vmem:[%s1 + $0x1e8] sm:$0xf]
  %v148 = vld [vmem:[%s1 + $0x1ec] sm:$0xf]
  %v149 = vld [vmem:[%s1 + $0x1f0] sm:$0xf]
  %v150 = vld [vmem:[%s1 + $0x1f4] sm:$0xf]
  %v151 = vld [vmem:[%s1 + $0x1f8] sm:$0xf]
  %v152 = vld [vmem:[%s1 + $0x1fc] sm:$0xf]
  %v153 = vld [vmem:[%s1 + $0x200] sm:$0xf]
  %v154 = vld [vmem:[%s1 + $0x204] sm:$0xf]
  %v155 = vld [vmem:[%s1 + $0x208] sm:$0xf]
  %v156 = vld [vmem:[%s1 + $0x20c] sm:$0xf]
  %v157 = vld [vmem:[%s1 + $0x210] sm:$0xf]
  %v158 = vld [vmem:[%s1 + $0x214] sm:$0xf]
  %v159 = vld [vmem:[%s1 + $0x218] sm:$0xf]
  %v160 = vld [vmem:[%s1 + $0x21c] sm:$0xf]
  %v161 = vld [vmem:[%s1 + $0x220] sm:$0xf]
  %v162 = vld [vmem:[%s1 + $0x224] sm:$0xf]
  %v163 = vld [vmem:[%s1 + $0x228] sm:$0xf]
  %v164 = vld [vmem:[%s1 + $0x22c] sm:$0xf]
  %v165 = vld [vmem:[%s1 + $0x230] sm:$0xf]
  %v166 = vld [vmem:[%s1 + $0x234] sm:$0xf]
  %v167 = vld [vmem:[%s1 + $0x238] sm:$0xf]
  %v168 = vld [vmem:[%s1 + $0x23c] sm:$0xf]
  %v169 = vld [vmem:[%s2] sm:$0x1]
  %v171 = vlaneseq
  %v172 = vshrl.u32 %v171, 7
  %v173 = vsub.s32 0, %v172
  %v174 = vrot.slane %v169, %v173
  %v186 = vunpack.c.l.b16 %v15
  %v187 = vunpack.c.h.b16 %v15
  %v188 = vunpack.c.l.b16 %v16
  %v189 = vunpack.c.h.b16 %v16
  %v190 = vunpack.c.l.b16 %v17
  %v191 = vunpack.c.h.b16 %v17
  %v192 = vunpack.c.l.b16 %v18
  %v193 = vunpack.c.h.b16 %v18
  %v194 = vunpack.c.l.b16 %v19
  %v195 = vunpack.c.l.b16 %v20
  %v196 = vunpack.c.h.b16 %v20
  %v197 = vunpack.c.l.b16 %v21
  %v198 = vunpack.c.h.b16 %v21
  %v199 = vunpack.c.l.b16 %v22
  %v200 = vunpack.c.h.b16 %v22
  %v201 = vunpack.c.l.b16 %v23
  %v202 = vunpack.c.h.b16 %v23
  %v203 = vunpack.c.l.b16 %v24
  %v204 = vpack.c.b16 %v195, %v186
  %v205 = vpack.c.b16 %v196, %v187
  %v206 = vpack.c.b16 %v197, %v188
  %v207 = vpack.c.b16 %v198, %v189
  %v208 = vpack.c.b16 %v199, %v190
  %v209 = vpack.c.b16 %v200, %v191
  %v210 = vpack.c.b16 %v201, %v192
  %v211 = vpack.c.b16 %v202, %v193
  %v212 = vpack.c.b16 %v203, %v194
  %v366 = vunpack.c.l.b16 %v25
  %v367 = vunpack.c.l.b16 %v26
  %v368 = vunpack.c.l.b16 %v27
  %v369 = vunpack.c.l.b16 %v28
  %v370 = vunpack.c.l.b16 %v29
  %v371 = vunpack.c.l.b16 %v30
  %v372 = vunpack.c.l.b16 %v31
  %v373 = vunpack.c.l.b16 %v32
  %v374 = vunpack.c.l.b16 %v33
  %v375 = vunpack.c.l.b16 %v34
  %v376 = vunpack.c.l.b16 %v35
  %v377 = vunpack.c.l.b16 %v36
  %v378 = vunpack.c.l.b16 %v37
  %v379 = vunpack.c.l.b16 %v38
  %v380 = vunpack.c.l.b16 %v39
  %v381 = vunpack.c.l.b16 %v40
  %v382 = vunpack.c.l.b16 %v41
  %v383 = vunpack.c.l.b16 %v42
  %v384 = vunpack.c.l.b16 %v43
  %v385 = vunpack.c.l.b16 %v44
  %v386 = vunpack.c.l.b16 %v45
  %v387 = vunpack.c.l.b16 %v46
  %v388 = vunpack.c.l.b16 %v47
  %v389 = vunpack.c.l.b16 %v48
  %v390 = vunpack.c.l.b16 %v49
  %v391 = vunpack.c.l.b16 %v50
  %v392 = vunpack.c.l.b16 %v51
  %v393 = vunpack.c.l.b16 %v52
  %v394 = vunpack.c.l.b16 %v53
  %v395 = vunpack.c.l.b16 %v54
  %v396 = vunpack.c.l.b16 %v55
  %v397 = vunpack.c.l.b16 %v56
  %v398 = vunpack.c.l.b16 %v57
  %v399 = vunpack.c.l.b16 %v58
  %v400 = vunpack.c.l.b16 %v59
  %v401 = vunpack.c.l.b16 %v60
  %v402 = vunpack.c.l.b16 %v61
  %v403 = vunpack.c.l.b16 %v62
  %v404 = vunpack.c.l.b16 %v63
  %v405 = vunpack.c.l.b16 %v64
  %v406 = vunpack.c.l.b16 %v65
  %v407 = vunpack.c.l.b16 %v66
  %v408 = vunpack.c.l.b16 %v67
  %v409 = vunpack.c.l.b16 %v68
  %v410 = vunpack.c.l.b16 %v69
  %v411 = vunpack.c.l.b16 %v70
  %v412 = vunpack.c.l.b16 %v71
  %v413 = vunpack.c.l.b16 %v72
  %v414 = vunpack.c.l.b16 %v73
  %v415 = vunpack.c.l.b16 %v74
  %v416 = vunpack.c.l.b16 %v75
  %v417 = vunpack.c.l.b16 %v76
  %v418 = vunpack.c.l.b16 %v77
  %v419 = vunpack.c.l.b16 %v78
  %v420 = vunpack.c.l.b16 %v79
  %v421 = vunpack.c.l.b16 %v80
  %v422 = vunpack.c.l.b16 %v81
  %v423 = vunpack.c.l.b16 %v82
  %v424 = vunpack.c.l.b16 %v83
  %v425 = vunpack.c.l.b16 %v84
  %v426 = vunpack.c.l.b16 %v85
  %v427 = vunpack.c.l.b16 %v86
  %v428 = vunpack.c.l.b16 %v87
  %v429 = vunpack.c.l.b16 %v88
  %v430 = vunpack.c.l.b16 %v89
  %v431 = vunpack.c.l.b16 %v90
  %v432 = vunpack.c.l.b16 %v91
  %v433 = vunpack.c.l.b16 %v92
  %v434 = vunpack.c.l.b16 %v93
  %v435 = vunpack.c.l.b16 %v94
  %v436 = vunpack.c.l.b16 %v95
  %v437 = vunpack.c.l.b16 %v96
  %v438 = vunpack.c.l.b16 %v97
  %v439 = vunpack.c.l.b16 %v98
  %v440 = vunpack.c.l.b16 %v99
  %v441 = vunpack.c.l.b16 %v100
  %v442 = vunpack.c.l.b16 %v101
  %v443 = vunpack.c.l.b16 %v102
  %v444 = vunpack.c.l.b16 %v103
  %v445 = vunpack.c.l.b16 %v104
  %v446 = vunpack.c.l.b16 %v105
  %v447 = vunpack.c.l.b16 %v106
  %v448 = vunpack.c.l.b16 %v107
  %v449 = vunpack.c.l.b16 %v108
  %v450 = vunpack.c.l.b16 %v109
  %v451 = vunpack.c.l.b16 %v110
  %v452 = vunpack.c.l.b16 %v111
  %v453 = vunpack.c.l.b16 %v112
  %v454 = vunpack.c.l.b16 %v113
  %v455 = vunpack.c.l.b16 %v114
  %v456 = vunpack.c.l.b16 %v115
  %v457 = vunpack.c.l.b16 %v116
  %v458 = vunpack.c.l.b16 %v117
  %v459 = vunpack.c.l.b16 %v118
  %v460 = vunpack.c.l.b16 %v119
  %v461 = vunpack.c.l.b16 %v120
  %v462 = vunpack.c.l.b16 %v121
  %v463 = vunpack.c.l.b16 %v122
  %v464 = vunpack.c.l.b16 %v123
  %v465 = vunpack.c.l.b16 %v124
  %v466 = vunpack.c.l.b16 %v125
  %v467 = vunpack.c.l.b16 %v126
  %v468 = vunpack.c.l.b16 %v127
  %v469 = vunpack.c.l.b16 %v128
  %v470 = vunpack.c.l.b16 %v129
  %v471 = vunpack.c.l.b16 %v130
  %v472 = vunpack.c.l.b16 %v131
  %v473 = vunpack.c.l.b16 %v132
  %v474 = vunpack.c.l.b16 %v133
  %v475 = vunpack.c.l.b16 %v134
  %v476 = vunpack.c.l.b16 %v135
  %v477 = vunpack.c.l.b16 %v136
  %v478 = vunpack.c.l.b16 %v137
  %v479 = vunpack.c.l.b16 %v138
  %v480 = vunpack.c.l.b16 %v139
  %v481 = vunpack.c.l.b16 %v140
  %v482 = vunpack.c.l.b16 %v141
  %v483 = vunpack.c.l.b16 %v142
  %v484 = vunpack.c.l.b16 %v143
  %v485 = vunpack.c.l.b16 %v144
  %v486 = vunpack.c.l.b16 %v145
  %v487 = vunpack.c.l.b16 %v146
  %v488 = vunpack.c.l.b16 %v147
  %v489 = vunpack.c.l.b16 %v148
  %v490 = vunpack.c.l.b16 %v149
  %v491 = vunpack.c.l.b16 %v150
  %v492 = vunpack.c.l.b16 %v151
  %v493 = vunpack.c.l.b16 %v152
  %v494 = vunpack.c.l.b16 %v153
  %v495 = vunpack.c.l.b16 %v154
  %v496 = vunpack.c.l.b16 %v155
  %v497 = vunpack.c.l.b16 %v156
  %v498 = vunpack.c.l.b16 %v157
  %v499 = vunpack.c.l.b16 %v158
  %v500 = vunpack.c.l.b16 %v159
  %v501 = vunpack.c.l.b16 %v160
  %v502 = vunpack.c.l.b16 %v161
  %v503 = vunpack.c.l.b16 %v162
  %v504 = vunpack.c.l.b16 %v163
  %v505 = vunpack.c.l.b16 %v164
  %v506 = vunpack.c.l.b16 %v165
  %v507 = vunpack.c.l.b16 %v166
  %v508 = vunpack.c.l.b16 %v167
  %v509 = vunpack.c.l.b16 %v168
  %v510 = vpack.c.b16 %v367, %v366
  %v511 = vpack.c.b16 %v369, %v368
  %v512 = vpack.c.b16 %v371, %v370
  %v513 = vpack.c.b16 %v373, %v372
  %v514 = vpack.c.b16 %v375, %v374
  %v515 = vpack.c.b16 %v377, %v376
  %v516 = vpack.c.b16 %v379, %v378
  %v517 = vpack.c.b16 %v381, %v380
  %v518 = vpack.c.b16 %v383, %v382
  %v519 = vpack.c.b16 %v385, %v384
  %v520 = vpack.c.b16 %v387, %v386
  %v521 = vpack.c.b16 %v389, %v388
  %v522 = vpack.c.b16 %v391, %v390
  %v523 = vpack.c.b16 %v393, %v392
  %v524 = vpack.c.b16 %v395, %v394
  %v525 = vpack.c.b16 %v397, %v396
  %v526 = vpack.c.b16 %v399, %v398
  %v527 = vpack.c.b16 %v401, %v400
  %v528 = vpack.c.b16 %v403, %v402
  %v529 = vpack.c.b16 %v405, %v404
  %v530 = vpack.c.b16 %v407, %v406
  %v531 = vpack.c.b16 %v409, %v408
  %v532 = vpack.c.b16 %v411, %v410
  %v533 = vpack.c.b16 %v413, %v412
  %v534 = vpack.c.b16 %v415, %v414
  %v535 = vpack.c.b16 %v417, %v416
  %v536 = vpack.c.b16 %v419, %v418
  %v537 = vpack.c.b16 %v421, %v420
  %v538 = vpack.c.b16 %v423, %v422
  %v539 = vpack.c.b16 %v425, %v424
  %v540 = vpack.c.b16 %v427, %v426
  %v541 = vpack.c.b16 %v429, %v428
  %v542 = vpack.c.b16 %v431, %v430
  %v543 = vpack.c.b16 %v433, %v432
  %v544 = vpack.c.b16 %v435, %v434
  %v545 = vpack.c.b16 %v437, %v436
  %v546 = vpack.c.b16 %v439, %v438
  %v547 = vpack.c.b16 %v441, %v440
  %v548 = vpack.c.b16 %v443, %v442
  %v549 = vpack.c.b16 %v445, %v444
  %v550 = vpack.c.b16 %v447, %v446
  %v551 = vpack.c.b16 %v449, %v448
  %v552 = vpack.c.b16 %v451, %v450
  %v553 = vpack.c.b16 %v453, %v452
  %v554 = vpack.c.b16 %v455, %v454
  %v555 = vpack.c.b16 %v457, %v456
  %v556 = vpack.c.b16 %v459, %v458
  %v557 = vpack.c.b16 %v461, %v460
  %v558 = vpack.c.b16 %v463, %v462
  %v559 = vpack.c.b16 %v465, %v464
  %v560 = vpack.c.b16 %v467, %v466
  %v561 = vpack.c.b16 %v469, %v468
  %v562 = vpack.c.b16 %v471, %v470
  %v563 = vpack.c.b16 %v473, %v472
  %v564 = vpack.c.b16 %v475, %v474
  %v565 = vpack.c.b16 %v477, %v476
  %v566 = vpack.c.b16 %v479, %v478
  %v567 = vpack.c.b16 %v481, %v480
  %v568 = vpack.c.b16 %v483, %v482
  %v569 = vpack.c.b16 %v485, %v484
  %v570 = vpack.c.b16 %v487, %v486
  %v571 = vpack.c.b16 %v489, %v488
  %v572 = vpack.c.b16 %v491, %v490
  %v573 = vpack.c.b16 %v493, %v492
  %v574 = vpack.c.b16 %v495, %v494
  %v575 = vpack.c.b16 %v497, %v496
  %v576 = vpack.c.b16 %v499, %v498
  %v577 = vpack.c.b16 %v501, %v500
  %v578 = vpack.c.b16 %v503, %v502
  %v579 = vpack.c.b16 %v505, %v504
  %v580 = vpack.c.b16 %v507, %v506
  %v581 = vpack.c.b16 %v509, %v508
  %654 = vmatprep.subr.bf16.mxu0 0
  %655 = vmatpush1.bf16.msra.mxu0 %v510
  %656 = vmatprep.subr.bf16.mxu0 0
  %657 = vmatpush1.bf16.msra.mxu0 %v511
  %658 = vmatprep.subr.bf16.mxu0 0
  %659 = vmatpush1.bf16.msra.mxu0 %v512
  %660 = vmatprep.subr.bf16.mxu0 0
  %661 = vmatpush1.bf16.msra.mxu0 %v513
  %662 = vmatprep.subr.bf16.mxu0 0
  %663 = vmatpush1.bf16.msra.mxu0 %v514
  %664 = vmatprep.subr.bf16.mxu0 0
  %665 = vmatpush1.bf16.msra.mxu0 %v515
  %666 = vmatprep.subr.bf16.mxu0 0
  %667 = vmatpush1.bf16.msra.mxu0 %v516
  %668 = vmatprep.subr.bf16.mxu0 0
  %669 = vmatpush1.bf16.msra.mxu0 %v517
  %670 = vmatprep.subr.bf16.mxu0 0
  %671 = vmatpush1.bf16.msra.mxu0 %v518
  %672 = vmatprep.subr.bf16.mxu0 0
  %673 = vmatpush1.bf16.msra.mxu0 %v519
  %674 = vmatprep.subr.bf16.mxu0 0
  %675 = vmatpush1.bf16.msra.mxu0 %v520
  %676 = vmatprep.subr.bf16.mxu0 0
  %677 = vmatpush1.bf16.msra.mxu0 %v521
  %678 = vmatprep.subr.bf16.mxu0 0
  %679 = vmatpush1.bf16.msra.mxu0 %v522
  %680 = vmatprep.subr.bf16.mxu0 0
  %681 = vmatpush1.bf16.msra.mxu0 %v523
  %682 = vmatprep.subr.bf16.mxu0 0
  %683 = vmatpush1.bf16.msra.mxu0 %v524
  %684 = vmatprep.subr.bf16.mxu0 0
  %685 = vmatpush1.bf16.msra.mxu0 %v525
  %686 = vmatprep.mubr.bf16.mxu0 %v205
  %687 = vmatmul.mubr.bf16.gmra.mrb[0].mxu0 %v204
  %v688 = vpop.f32.mrb[0].mxu0
  %v689 = vadd.f32 %v174, %v688
  %v690 = vpop.f32.mrb[0].mxu0
  %v691 = vpop.f32.mrb[0].mxu0
  %v692 = vadd.f32 %v174, %v691
  %v693 = vpop.f32.mrb[0].mxu0
  %694 = vdwg.mxu0
  %695 = vmatprep.subr.bf16.mxu0 0
  %696 = vmatpush1.bf16.msra.mxu0 %v526
  %697 = vmatprep.subr.bf16.mxu0 0
  %698 = vmatpush1.bf16.msra.mxu0 %v527
  %699 = vmatprep.subr.bf16.mxu0 0
  %700 = vmatpush1.bf16.msra.mxu0 %v528
  %701 = vmatprep.subr.bf16.mxu0 0
  %702 = vmatpush1.bf16.msra.mxu0 %v529
  %703 = vmatprep.subr.bf16.mxu0 0
  %704 = vmatpush1.bf16.msra.mxu0 %v530
  %705 = vmatprep.subr.bf16.mxu0 0
  %706 = vmatpush1.bf16.msra.mxu0 %v531
  %707 = vmatprep.subr.bf16.mxu0 0
  %708 = vmatpush1.bf16.msra.mxu0 %v532
  %709 = vmatprep.subr.bf16.mxu0 0
  %710 = vmatpush1.bf16.msra.mxu0 %v533
  %711 = vmatprep.subr.bf16.mxu0 0
  %712 = vmatpush1.bf16.msra.mxu0 %v534
  %713 = vmatprep.subr.bf16.mxu0 0
  %714 = vmatpush1.bf16.msra.mxu0 %v535
  %715 = vmatprep.subr.bf16.mxu0 0
  %716 = vmatpush1.bf16.msra.mxu0 %v536
  %717 = vmatprep.subr.bf16.mxu0 0
  %718 = vmatpush1.bf16.msra.mxu0 %v537
  %719 = vmatprep.subr.bf16.mxu0 0
  %720 = vmatpush1.bf16.msra.mxu0 %v538
  %721 = vmatprep.subr.bf16.mxu0 0
  %722 = vmatpush1.bf16.msra.mxu0 %v539
  %723 = vmatprep.subr.bf16.mxu0 0
  %724 = vmatpush1.bf16.msra.mxu0 %v540
  %725 = vmatprep.subr.bf16.mxu0 0
  %726 = vmatpush1.bf16.msra.mxu0 %v541
  %727 = vmatprep.mubr.bf16.mxu0 %v207
  %728 = vmatmul.mubr.bf16.gmra.mrb[0].mxu0 %v206
  %v729 = vpop.f32.mrb[0].mxu0
  %v730 = vadd.f32 %v689, %v729
  %v731 = vpop.f32.mrb[0].mxu0
  %v732 = vpop.f32.mrb[0].mxu0
  %v733 = vadd.f32 %v692, %v732
  %v734 = vpop.f32.mrb[0].mxu0
  %735 = vdwg.mxu0
  %736 = vmatprep.subr.bf16.mxu0 0
  %737 = vmatpush1.bf16.msra.mxu0 %v542
  %738 = vmatprep.subr.bf16.mxu0 0
  %739 = vmatpush1.bf16.msra.mxu0 %v543
  %740 = vmatprep.subr.bf16.mxu0 0
  %741 = vmatpush1.bf16.msra.mxu0 %v544
  %742 = vmatprep.subr.bf16.mxu0 0
  %743 = vmatpush1.bf16.msra.mxu0 %v545
  %744 = vmatprep.subr.bf16.mxu0 0
  %745 = vmatpush1.bf16.msra.mxu0 %v546
  %746 = vmatprep.subr.bf16.mxu0 0
  %747 = vmatpush1.bf16.msra.mxu0 %v547
  %748 = vmatprep.subr.bf16.mxu0 0
  %749 = vmatpush1.bf16.msra.mxu0 %v548
  %750 = vmatprep.subr.bf16.mxu0 0
  %751 = vmatpush1.bf16.msra.mxu0 %v549
  %752 = vmatprep.subr.bf16.mxu0 0
  %753 = vmatpush1.bf16.msra.mxu0 %v550
  %754 = vmatprep.subr.bf16.mxu0 0
  %755 = vmatpush1.bf16.msra.mxu0 %v551
  %756 = vmatprep.subr.bf16.mxu0 0
  %757 = vmatpush1.bf16.msra.mxu0 %v552
  %758 = vmatprep.subr.bf16.mxu0 0
  %759 = vmatpush1.bf16.msra.mxu0 %v553
  %760 = vmatprep.subr.bf16.mxu0 0
  %761 = vmatpush1.bf16.msra.mxu0 %v554
  %762 = vmatprep.subr.bf16.mxu0 0
  %763 = vmatpush1.bf16.msra.mxu0 %v555
  %764 = vmatprep.subr.bf16.mxu0 0
  %765 = vmatpush1.bf16.msra.mxu0 %v556
  %766 = vmatprep.subr.bf16.mxu0 0
  %767 = vmatpush1.bf16.msra.mxu0 %v557
  %768 = vmatprep.mubr.bf16.mxu0 %v209
  %769 = vmatmul.mubr.bf16.gmra.mrb[0].mxu0 %v208
  %v770 = vpop.f32.mrb[0].mxu0
  %v771 = vadd.f32 %v730, %v770
  %v772 = vpop.f32.mrb[0].mxu0
  %v773 = vpop.f32.mrb[0].mxu0
  %v774 = vadd.f32 %v733, %v773
  %v775 = vpop.f32.mrb[0].mxu0
  %776 = vdwg.mxu0
  %777 = vmatprep.subr.bf16.mxu0 0
  %778 = vmatpush1.bf16.msra.mxu0 %v558
  %779 = vmatprep.subr.bf16.mxu0 0
  %780 = vmatpush1.bf16.msra.mxu0 %v559
  %781 = vmatprep.subr.bf16.mxu0 0
  %782 = vmatpush1.bf16.msra.mxu0 %v560
  %783 = vmatprep.subr.bf16.mxu0 0
  %784 = vmatpush1.bf16.msra.mxu0 %v561
  %785 = vmatprep.subr.bf16.mxu0 0
  %786 = vmatpush1.bf16.msra.mxu0 %v562
  %787 = vmatprep.subr.bf16.mxu0 0
  %788 = vmatpush1.bf16.msra.mxu0 %v563
  %789 = vmatprep.subr.bf16.mxu0 0
  %790 = vmatpush1.bf16.msra.mxu0 %v564
  %791 = vmatprep.subr.bf16.mxu0 0
  %792 = vmatpush1.bf16.msra.mxu0 %v565
  %793 = vmatprep.subr.bf16.mxu0 0
  %794 = vmatpush1.bf16.msra.mxu0 %v566
  %795 = vmatprep.subr.bf16.mxu0 0
  %796 = vmatpush1.bf16.msra.mxu0 %v567
  %797 = vmatprep.subr.bf16.mxu0 0
  %798 = vmatpush1.bf16.msra.mxu0 %v568
  %799 = vmatprep.subr.bf16.mxu0 0
  %800 = vmatpush1.bf16.msra.mxu0 %v569
  %801 = vmatprep.subr.bf16.mxu0 0
  %802 = vmatpush1.bf16.msra.mxu0 %v570
  %803 = vmatprep.subr.bf16.mxu0 0
  %804 = vmatpush1.bf16.msra.mxu0 %v571
  %805 = vmatprep.subr.bf16.mxu0 0
  %806 = vmatpush1.bf16.msra.mxu0 %v572
  %807 = vmatprep.subr.bf16.mxu0 0
  %808 = vmatpush1.bf16.msra.mxu0 %v573
  %809 = vmatprep.mubr.bf16.mxu0 %v211
  %810 = vmatmul.mubr.bf16.gmra.mrb[0].mxu0 %v210
  %v811 = vpop.f32.mrb[0].mxu0
  %v812 = vadd.f32 %v771, %v811
  %v813 = vpop.f32.mrb[0].mxu0
  %v814 = vpop.f32.mrb[0].mxu0
  %v815 = vadd.f32 %v774, %v814
  %v816 = vpop.f32.mrb[0].mxu0
  %817 = vdwg.mxu0
  %818 = vmatprep.subr.bf16.mxu0 0
  %819 = vmatpush1.bf16.msra.mxu0 %v574
  %820 = vmatprep.subr.bf16.mxu0 0
  %821 = vmatpush1.bf16.msra.mxu0 %v575
  %822 = vmatprep.subr.bf16.mxu0 0
  %823 = vmatpush1.bf16.msra.mxu0 %v576
  %824 = vmatprep.subr.bf16.mxu0 0
  %825 = vmatpush1.bf16.msra.mxu0 %v577
  %826 = vmatprep.subr.bf16.mxu0 0
  %827 = vmatpush1.bf16.msra.mxu0 %v578
  %828 = vmatprep.subr.bf16.mxu0 0
  %829 = vmatpush1.bf16.msra.mxu0 %v579
  %830 = vmatprep.subr.bf16.mxu0 0
  %831 = vmatpush1.bf16.msra.mxu0 %v580
  %832 = vmatprep.subr.bf16.mxu0 0
  %833 = vmatpush1.bf16.msra.mxu0 %v581
  %834 = vmatprep.subr.bf16.mxu0 0
  %835 = vmatpush1.bf16.msra.mxu0 0
  %836 = vmatprep.subr.bf16.mxu0 0
  %837 = vmatpush1.bf16.msra.mxu0 0
  %838 = vmatprep.subr.bf16.mxu0 0
  %839 = vmatpush1.bf16.msra.mxu0 0
  %840 = vmatprep.subr.bf16.mxu0 0
  %841 = vmatpush1.bf16.msra.mxu0 0
  %842 = vmatprep.subr.bf16.mxu0 0
  %843 = vmatpush1.bf16.msra.mxu0 0
  %844 = vmatprep.subr.bf16.mxu0 0
  %845 = vmatpush1.bf16.msra.mxu0 0
  %846 = vmatprep.subr.bf16.mxu0 0
  %847 = vmatpush1.bf16.msra.mxu0 0
  %848 = vmatprep.subr.bf16.mxu0 0
  %849 = vmatpush1.bf16.msra.mxu0 0
  %850 = vmatprep.mubr.bf16.mxu0 0
  %851 = vmatmul.mubr.bf16.gmra.mrb[0].mxu0 %v212
  %v852 = vpop.f32.mrb[0].mxu0
  %v853 = vadd.f32 %v812, %v852
  %v854 = vpop.f32.mrb[0].mxu0
  %v855 = vpop.f32.mrb[0].mxu0
  %v856 = vadd.f32 %v815, %v855
  %v857 = vpop.f32.mrb[0].mxu0
  %858 = vdwg.mxu0
  %v859 = vmax.f32 %v853, 0.0
  %v860 = vmax.f32 %v856, 0.0
  %v861 = vpack.c.bf16 %v860, %v859
  %v863 = vunpack.c.l.b16 %v861
  %v864 = vunpack.c.h.b16 %v861
  %v865 = vpack.c.b16 %v863, %v863
  %v866 = vpack.c.b16 %v864, %v864
  %869 = vst [vmem:[%s3] sm:$0xf] %v865
  %870 = vst [vmem:[%s3 + $0x4] sm:$0xf] %v866
  // Predicated region
  $region14: #{convnet_forward.5} parent=0 // pred_check
    _
  $region15: #{convnet_forward.5} parent=0 // pred_check_branch
    %872 = sbr.rel (0) target = $region17
  $region16: #{convnet_forward.5} parent=0 // pred_region
    _
  $region17: #{convnet_forward.5} parent=0 // pred_fallthru
    _
  // Predicated region
  $region18: #{convnet_forward.5} parent=0 // pred_check
    _
  $region19: #{convnet_forward.5} parent=0 // pred_check_branch
    %874 = sbr.rel (0) target = $region21
  $region20: #{convnet_forward.5} parent=0 // pred_region
    _
  $region21: #{convnet_forward.5} parent=0 // pred_fallthru
    _

// kernel: convnet_forward.6
$region0: #{convnet_forward.6}
  #allocation0 [shape = 'u32[]', space=smem, size = 0x4, offset = 0x4, fixed_abs, tag = 'smem constant byte address 0x4 - core index']
  #allocation1 [shape = 'u32[144,128]{1,0:T(1,128)}', space=vmem, size = 0x12000, scoped, tag = 'internal scratch']
  %s0 = inlined_call_operand.vmem [shape: bf16[16,576], index: 0, kind: input, shape index: {}]
  %s1 = inlined_call_operand.vmem [shape: bf16[576,128], index: 1, kind: input, shape index: {}]
  %s2 = inlined_call_operand.vmem [shape: f32[1,128], index: 2, kind: input, shape index: {}]
  %s3 = inlined_call_operand.vmem [shape: bf16[16,128], index: 3, kind: output, shape index: {}]
  %s4 = sld [smem:[#allocation0]]
  $region22: #{convnet_forward.6} parent=0
    _
  %s6 = ssub.s32 1, %s4
  %s7 = scalar_select 0, %s6, %s4
  // Predicated region
  $region2: #{convnet_forward.6} parent=0 // pred_check
    _
  $region3: #{convnet_forward.6} parent=0 // pred_check_branch
    %9 = sbr.rel (0) target = $region5
  $region4: #{convnet_forward.6} parent=0 // pred_region
    _
  $region5: #{convnet_forward.6} parent=0 // pred_fallthru
    _
  // Predicated region
  $region6: #{convnet_forward.6} parent=0 // pred_check
    _
  $region7: #{convnet_forward.6} parent=0 // pred_check_branch
    %11 = sbr.rel (0) target = $region9
  $region8: #{convnet_forward.6} parent=0 // pred_region
    _
  $region9: #{convnet_forward.6} parent=0 // pred_fallthru
    _
  // Predicated region
  $region10: #{convnet_forward.6} parent=0 // pred_check
    _
  $region11: #{convnet_forward.6} parent=0 // pred_check_branch
    %13 = sbr.rel (0) target = $region13
  $region12: #{convnet_forward.6} parent=0 // pred_region
    _
  $region13: #{convnet_forward.6} parent=0 // pred_fallthru
    _
  %v15 = vld [vmem:[%s0] sm:$0xff]
  %v16 = vld [vmem:[%s0 + $0x8] sm:$0xff]
  %v17 = vld [vmem:[%s0 + $0x10] sm:$0xf]
  %v18 = vld [vmem:[%s0 + $0x14] sm:$0xff]
  %v19 = vld [vmem:[%s0 + $0x1c] sm:$0xff]
  %v20 = vld [vmem:[%s0 + $0x24] sm:$0xf]
  %v21 = vld [vmem:[%s1] sm:$0xf]
  %v22 = vld [vmem:[%s1 + $0x4] sm:$0xf]
  %v23 = vld [vmem:[%s1 + $0x8] sm:$0xf]
  %v24 = vld [vmem:[%s1 + $0xc] sm:$0xf]
  %v25 = vld [vmem:[%s1 + $0x10] sm:$0xf]
  %v26 = vld [vmem:[%s1 + $0x14] sm:$0xf]
  %v27 = vld [vmem:[%s1 + $0x18] sm:$0xf]
  %v28 = vld [vmem:[%s1 + $0x1c] sm:$0xf]
  %v29 = vld [vmem:[%s1 + $0x20] sm:$0xf]
  %v30 = vld [vmem:[%s1 + $0x24] sm:$0xf]
  %v31 = vld [vmem:[%s1 + $0x28] sm:$0xf]
  %v32 = vld [vmem:[%s1 + $0x2c] sm:$0xf]
  %v33 = vld [vmem:[%s1 + $0x30] sm:$0xf]
  %v34 = vld [vmem:[%s1 + $0x34] sm:$0xf]
  %v35 = vld [vmem:[%s1 + $0x38] sm:$0xf]
  %v36 = vld [vmem:[%s1 + $0x3c] sm:$0xf]
  %v37 = vld [vmem:[%s1 + $0x40] sm:$0xf]
  %v38 = vld [vmem:[%s1 + $0x44] sm:$0xf]
  %v39 = vld [vmem:[%s1 + $0x48] sm:$0xf]
  %v40 = vld [vmem:[%s1 + $0x4c] sm:$0xf]
  %v41 = vld [vmem:[%s1 + $0x50] sm:$0xf]
  %v42 = vld [vmem:[%s1 + $0x54] sm:$0xf]
  %v43 = vld [vmem:[%s1 + $0x58] sm:$0xf]
  %v44 = vld [vmem:[%s1 + $0x5c] sm:$0xf]
  %v45 = vld [vmem:[%s1 + $0x60] sm:$0xf]
  %v46 = vld [vmem:[%s1 + $0x64] sm:$0xf]
  %v47 = vld [vmem:[%s1 + $0x68] sm:$0xf]
  %v48 = vld [vmem:[%s1 + $0x6c] sm:$0xf]
  %v49 = vld [vmem:[%s1 + $0x70] sm:$0xf]
  %v50 = vld [vmem:[%s1 + $0x74] sm:$0xf]
  %v51 = vld [vmem:[%s1 + $0x78] sm:$0xf]
  %v52 = vld [vmem:[%s1 + $0x7c] sm:$0xf]
  %v53 = vld [vmem:[%s1 + $0x80] sm:$0xf]
  %v54 = vld [vmem:[%s1 + $0x84] sm:$0xf]
  %v55 = vld [vmem:[%s1 + $0x88] sm:$0xf]
  %v56 = vld [vmem:[%s1 + $0x8c] sm:$0xf]
  %v57 = vld [vmem:[%s1 + $0x90] sm:$0xf]
  %v58 = vld [vmem:[%s1 + $0x94] sm:$0xf]
  %v59 = vld [vmem:[%s1 + $0x98] sm:$0xf]
  %v60 = vld [vmem:[%s1 + $0x9c] sm:$0xf]
  %v61 = vld [vmem:[%s1 + $0xa0] sm:$0xf]
  %v62 = vld [vmem:[%s1 + $0xa4] sm:$0xf]
  %v63 = vld [vmem:[%s1 + $0xa8] sm:$0xf]
  %v64 = vld [vmem:[%s1 + $0xac] sm:$0xf]
  %v65 = vld [vmem:[%s1 + $0xb0] sm:$0xf]
  %v66 = vld [vmem:[%s1 + $0xb4] sm:$0xf]
  %v67 = vld [vmem:[%s1 + $0xb8] sm:$0xf]
  %v68 = vld [vmem:[%s1 + $0xbc] sm:$0xf]
  %v69 = vld [vmem:[%s1 + $0xc0] sm:$0xf]
  %v70 = vld [vmem:[%s1 + $0xc4] sm:$0xf]
  %v71 = vld [vmem:[%s1 + $0xc8] sm:$0xf]
  %v72 = vld [vmem:[%s1 + $0xcc] sm:$0xf]
  %v73 = vld [vmem:[%s1 + $0xd0] sm:$0xf]
  %v74 = vld [vmem:[%s1 + $0xd4] sm:$0xf]
  %v75 = vld [vmem:[%s1 + $0xd8] sm:$0xf]
  %v76 = vld [vmem:[%s1 + $0xdc] sm:$0xf]
  %v77 = vld [vmem:[%s1 + $0xe0] sm:$0xf]
  %v78 = vld [vmem:[%s1 + $0xe4] sm:$0xf]
  %v79 = vld [vmem:[%s1 + $0xe8] sm:$0xf]
  %v80 = vld [vmem:[%s1 + $0xec] sm:$0xf]
  %v81 = vld [vmem:[%s1 + $0xf0] sm:$0xf]
  %v82 = vld [vmem:[%s1 + $0xf4] sm:$0xf]
  %v83 = vld [vmem:[%s1 + $0xf8] sm:$0xf]
  %v84 = vld [vmem:[%s1 + $0xfc] sm:$0xf]
  %v85 = vld [vmem:[%s1 + $0x100] sm:$0xf]
  %v86 = vld [vmem:[%s1 + $0x104] sm:$0xf]
  %v87 = vld [vmem:[%s1 + $0x108] sm:$0xf]
  %v88 = vld [vmem:[%s1 + $0x10c] sm:$0xf]
  %v89 = vld [vmem:[%s1 + $0x110] sm:$0xf]
  %v90 = vld [vmem:[%s1 + $0x114] sm:$0xf]
  %v91 = vld [vmem:[%s1 + $0x118] sm:$0xf]
  %v92 = vld [vmem:[%s1 + $0x11c] sm:$0xf]
  %v93 = vld [vmem:[%s2] sm:$0x1]
  %v95 = vlaneseq
  %v96 = vshrl.u32 %v95, 7
  %v97 = vsub.s32 0, %v96
  %v98 = vrot.slane %v93, %v97
  %v106 = vunpack.c.l.b16 %v15
  %v107 = vunpack.c.h.b16 %v15
  %v108 = vunpack.c.l.b16 %v16
  %v109 = vunpack.c.h.b16 %v16
  %v110 = vunpack.c.l.b16 %v17
  %v111 = vunpack.c.l.b16 %v18
  %v112 = vunpack.c.h.b16 %v18
  %v113 = vunpack.c.l.b16 %v19
  %v114 = vunpack.c.h.b16 %v19
  %v115 = vunpack.c.l.b16 %v20
  %v116 = vpack.c.b16 %v111, %v106
  %v117 = vpack.c.b16 %v112, %v107
  %v118 = vpack.c.b16 %v113, %v108
  %v119 = vpack.c.b16 %v114, %v109
  %v120 = vpack.c.b16 %v115, %v110
  %v197 = vunpack.c.l.b16 %v21
  %v198 = vunpack.c.l.b16 %v22
  %v199 = vunpack.c.l.b16 %v23
  %v200 = vunpack.c.l.b16 %v24
  %v201 = vunpack.c.l.b16 %v25
  %v202 = vunpack.c.l.b16 %v26
  %v203 = vunpack.c.l.b16 %v27
  %v204 = vunpack.c.l.b16 %v28
  %v205 = vunpack.c.l.b16 %v29
  %v206 = vunpack.c.l.b16 %v30
  %v207 = vunpack.c.l.b16 %v31
  %v208 = vunpack.c.l.b16 %v32
  %v209 = vunpack.c.l.b16 %v33
  %v210 = vunpack.c.l.b16 %v34
  %v211 = vunpack.c.l.b16 %v35
  %v212 = vunpack.c.l.b16 %v36
  %v213 = vunpack.c.l.b16 %v37
  %v214 = vunpack.c.l.b16 %v38
  %v215 = vunpack.c.l.b16 %v39
  %v216 = vunpack.c.l.b16 %v40
  %v217 = vunpack.c.l.b16 %v41
  %v218 = vunpack.c.l.b16 %v42
  %v219 = vunpack.c.l.b16 %v43
  %v220 = vunpack.c.l.b16 %v44
  %v221 = vunpack.c.l.b16 %v45
  %v222 = vunpack.c.l.b16 %v46
  %v223 = vunpack.c.l.b16 %v47
  %v224 = vunpack.c.l.b16 %v48
  %v225 = vunpack.c.l.b16 %v49
  %v226 = vunpack.c.l.b16 %v50
  %v227 = vunpack.c.l.b16 %v51
  %v228 = vunpack.c.l.b16 %v52
  %v229 = vunpack.c.l.b16 %v53
  %v230 = vunpack.c.l.b16 %v54
  %v231 = vunpack.c.l.b16 %v55
  %v232 = vunpack.c.l.b16 %v56
  %v233 = vunpack.c.l.b16 %v57
  %v234 = vunpack.c.l.b16 %v58
  %v235 = vunpack.c.l.b16 %v59
  %v236 = vunpack.c.l.b16 %v60
  %v237 = vunpack.c.l.b16 %v61
  %v238 = vunpack.c.l.b16 %v62
  %v239 = vunpack.c.l.b16 %v63
  %v240 = vunpack.c.l.b16 %v64
  %v241 = vunpack.c.l.b16 %v65
  %v242 = vunpack.c.l.b16 %v66
  %v243 = vunpack.c.l.b16 %v67
  %v244 = vunpack.c.l.b16 %v68
  %v245 = vunpack.c.l.b16 %v69
  %v246 = vunpack.c.l.b16 %v70
  %v247 = vunpack.c.l.b16 %v71
  %v248 = vunpack.c.l.b16 %v72
  %v249 = vunpack.c.l.b16 %v73
  %v250 = vunpack.c.l.b16 %v74
  %v251 = vunpack.c.l.b16 %v75
  %v252 = vunpack.c.l.b16 %v76
  %v253 = vunpack.c.l.b16 %v77
  %v254 = vunpack.c.l.b16 %v78
  %v255 = vunpack.c.l.b16 %v79
  %v256 = vunpack.c.l.b16 %v80
  %v257 = vunpack.c.l.b16 %v81
  %v258 = vunpack.c.l.b16 %v82
  %v259 = vunpack.c.l.b16 %v83
  %v260 = vunpack.c.l.b16 %v84
  %v261 = vunpack.c.l.b16 %v85
  %v262 = vunpack.c.l.b16 %v86
  %v263 = vunpack.c.l.b16 %v87
  %v264 = vunpack.c.l.b16 %v88
  %v265 = vunpack.c.l.b16 %v89
  %v266 = vunpack.c.l.b16 %v90
  %v267 = vunpack.c.l.b16 %v91
  %v268 = vunpack.c.l.b16 %v92
  %v269 = vpack.c.b16 %v198, %v197
  %v270 = vpack.c.b16 %v200, %v199
  %v271 = vpack.c.b16 %v202, %v201
  %v272 = vpack.c.b16 %v204, %v203
  %v273 = vpack.c.b16 %v206, %v205
  %v274 = vpack.c.b16 %v208, %v207
  %v275 = vpack.c.b16 %v210, %v209
  %v276 = vpack.c.b16 %v212, %v211
  %v277 = vpack.c.b16 %v214, %v213
  %v278 = vpack.c.b16 %v216, %v215
  %v279 = vpack.c.b16 %v218, %v217
  %v280 = vpack.c.b16 %v220, %v219
  %v281 = vpack.c.b16 %v222, %v221
  %v282 = vpack.c.b16 %v224, %v223
  %v283 = vpack.c.b16 %v226, %v225
  %v284 = vpack.c.b16 %v228, %v227
  %v285 = vpack.c.b16 %v230, %v229
  %v286 = vpack.c.b16 %v232, %v231
  %v287 = vpack.c.b16 %v234, %v233
  %v288 = vpack.c.b16 %v236, %v235
  %v289 = vpack.c.b16 %v238, %v237
  %v290 = vpack.c.b16 %v240, %v239
  %v291 = vpack.c.b16 %v242, %v241
  %v292 = vpack.c.b16 %v244, %v243
  %v293 = vpack.c.b16 %v246, %v245
  %v294 = vpack.c.b16 %v248, %v247
  %v295 = vpack.c.b16 %v250, %v249
  %v296 = vpack.c.b16 %v252, %v251
  %v297 = vpack.c.b16 %v254, %v253
  %v298 = vpack.c.b16 %v256, %v255
  %v299 = vpack.c.b16 %v258, %v257
  %v300 = vpack.c.b16 %v260, %v259
  %v301 = vpack.c.b16 %v262, %v261
  %v302 = vpack.c.b16 %v264, %v263
  %v303 = vpack.c.b16 %v266, %v265
  %v304 = vpack.c.b16 %v268, %v267
  %vm341 = vcmask 523264
  %v343 = vsel %vm341, %v120, 0
  %345 = vmatprep.subr.bf16.mxu0 0
  %346 = vmatpush1.bf16.msra.mxu0 %v269
  %347 = vmatprep.subr.bf16.mxu0 0
  %348 = vmatpush1.bf16.msra.mxu0 %v270
  %349 = vmatprep.subr.bf16.mxu0 0
  %350 = vmatpush1.bf16.msra.mxu0 %v271
  %351 = vmatprep.subr.bf16.mxu0 0
  %352 = vmatpush1.bf16.msra.mxu0 %v272
  %353 = vmatprep.subr.bf16.mxu0 0
  %354 = vmatpush1.bf16.msra.mxu0 %v273
  %355 = vmatprep.subr.bf16.mxu0 0
  %356 = vmatpush1.bf16.msra.mxu0 %v274
  %357 = vmatprep.subr.bf16.mxu0 0
  %358 = vmatpush1.bf16.msra.mxu0 %v275
  %359 = vmatprep.subr.bf16.mxu0 0
  %360 = vmatpush1.bf16.msra.mxu0 %v276
  %361 = vmatprep.subr.bf16.mxu0 0
  %362 = vmatpush1.bf16.msra.mxu0 %v277
  %363 = vmatprep.subr.bf16.mxu0 0
  %364 = vmatpush1.bf16.msra.mxu0 %v278
  %365 = vmatprep.subr.bf16.mxu0 0
  %366 = vmatpush1.bf16.msra.mxu0 %v279
  %367 = vmatprep.subr.bf16.mxu0 0
  %368 = vmatpush1.bf16.msra.mxu0 %v280
  %369 = vmatprep.subr.bf16.mxu0 0
  %370 = vmatpush1.bf16.msra.mxu0 %v281
  %371 = vmatprep.subr.bf16.mxu0 0
  %372 = vmatpush1.bf16.msra.mxu0 %v282
  %373 = vmatprep.subr.bf16.mxu0 0
  %374 = vmatpush1.bf16.msra.mxu0 %v283
  %375 = vmatprep.subr.bf16.mxu0 0
  %376 = vmatpush1.bf16.msra.mxu0 %v284
  %377 = vmatprep.mubr.bf16.mxu0 %v117
  %378 = vmatmul.mubr.bf16.gmra.mrb[0].mxu0 %v116
  %v379 = vpop.f32.mrb[0].mxu0
  %v380 = vadd.f32 %v98, %v379
  %v381 = vpop.f32.mrb[0].mxu0
  %v382 = vpop.f32.mrb[0].mxu0
  %v383 = vadd.f32 %v98, %v382
  %v384 = vpop.f32.mrb[0].mxu0
  %385 = vdwg.mxu0
  %386 = vmatprep.subr.bf16.mxu0 0
  %387 = vmatpush1.bf16.msra.mxu0 %v285
  %388 = vmatprep.subr.bf16.mxu0 0
  %389 = vmatpush1.bf16.msra.mxu0 %v286
  %390 = vmatprep.subr.bf16.mxu0 0
  %391 = vmatpush1.bf16.msra.mxu0 %v287
  %392 = vmatprep.subr.bf16.mxu0 0
  %393 = vmatpush1.bf16.msra.mxu0 %v288
  %394 = vmatprep.subr.bf16.mxu0 0
  %395 = vmatpush1.bf16.msra.mxu0 %v289
  %396 = vmatprep.subr.bf16.mxu0 0
  %397 = vmatpush1.bf16.msra.mxu0 %v290
  %398 = vmatprep.subr.bf16.mxu0 0
  %399 = vmatpush1.bf16.msra.mxu0 %v291
  %400 = vmatprep.subr.bf16.mxu0 0
  %401 = vmatpush1.bf16.msra.mxu0 %v292
  %402 = vmatprep.subr.bf16.mxu0 0
  %403 = vmatpush1.bf16.msra.mxu0 %v293
  %404 = vmatprep.subr.bf16.mxu0 0
  %405 = vmatpush1.bf16.msra.mxu0 %v294
  %406 = vmatprep.subr.bf16.mxu0 0
  %407 = vmatpush1.bf16.msra.mxu0 %v295
  %408 = vmatprep.subr.bf16.mxu0 0
  %409 = vmatpush1.bf16.msra.mxu0 %v296
  %410 = vmatprep.subr.bf16.mxu0 0
  %411 = vmatpush1.bf16.msra.mxu0 %v297
  %412 = vmatprep.subr.bf16.mxu0 0
  %413 = vmatpush1.bf16.msra.mxu0 %v298
  %414 = vmatprep.subr.bf16.mxu0 0
  %415 = vmatpush1.bf16.msra.mxu0 %v299
  %416 = vmatprep.subr.bf16.mxu0 0
  %417 = vmatpush1.bf16.msra.mxu0 %v300
  %418 = vmatprep.mubr.bf16.mxu0 %v119
  %419 = vmatmul.mubr.bf16.gmra.mrb[0].mxu0 %v118
  %v420 = vpop.f32.mrb[0].mxu0
  %v421 = vadd.f32 %v380, %v420
  %v422 = vpop.f32.mrb[0].mxu0
  %v423 = vpop.f32.mrb[0].mxu0
  %v424 = vadd.f32 %v383, %v423
  %v425 = vpop.f32.mrb[0].mxu0
  %426 = vdwg.mxu0
  %427 = vmatprep.subr.bf16.mxu0 0
  %428 = vmatpush1.bf16.msra.mxu0 %v301
  %429 = vmatprep.subr.bf16.mxu0 0
  %430 = vmatpush1.bf16.msra.mxu0 %v302
  %431 = vmatprep.subr.bf16.mxu0 0
  %432 = vmatpush1.bf16.msra.mxu0 %v303
  %433 = vmatprep.subr.bf16.mxu0 0
  %434 = vmatpush1.bf16.msra.mxu0 %v304
  %435 = vmatprep.subr.bf16.mxu0 0
  %436 = vmatpush1.bf16.msra.mxu0 0
  %437 = vmatprep.subr.bf16.mxu0 0
  %438 = vmatpush1.bf16.msra.mxu0 0
  %439 = vmatprep.subr.bf16.mxu0 0
  %440 = vmatpush1.bf16.msra.mxu0 0
  %441 = vmatprep.subr.bf16.mxu0 0
  %442 = vmatpush1.bf16.msra.mxu0 0
  %443 = vmatprep.subr.bf16.mxu0 0
  %444 = vmatpush1.bf16.msra.mxu0 0
  %445 = vmatprep.subr.bf16.mxu0 0
  %446 = vmatpush1.bf16.msra.mxu0 0
  %447 = vmatprep.subr.bf16.mxu0 0
  %448 = vmatpush1.bf16.msra.mxu0 0
  %449 = vmatprep.subr.bf16.mxu0 0
  %450 = vmatpush1.bf16.msra.mxu0 0
  %451 = vmatprep.subr.bf16.mxu0 0
  %452 = vmatpush1.bf16.msra.mxu0 0
  %453 = vmatprep.subr.bf16.mxu0 0
  %454 = vmatpush1.bf16.msra.mxu0 0
  %455 = vmatprep.subr.bf16.mxu0 0
  %456 = vmatpush1.bf16.msra.mxu0 0
  %457 = vmatprep.subr.bf16.mxu0 0
  %458 = vmatpush1.bf16.msra.mxu0 0
  %459 = vmatprep.mubr.bf16.mxu0 0
  %460 = vmatmul.mubr.bf16.gmra.mrb[0].mxu0 %v343
  %v461 = vpop.f32.mrb[0].mxu0
  %v462 = vadd.f32 %v421, %v461
  %v463 = vpop.f32.mrb[0].mxu0
  %v464 = vpop.f32.mrb[0].mxu0
  %v465 = vadd.f32 %v424, %v464
  %v466 = vpop.f32.mrb[0].mxu0
  %467 = vdwg.mxu0
  %v468 = vmax.f32 %v462, 0.0
  %v469 = vmax.f32 %v465, 0.0
  %v470 = vpack.c.bf16 %v469, %v468
  %v472 = vunpack.c.l.b16 %v470
  %v473 = vunpack.c.h.b16 %v470
  %v474 = vpack.c.b16 %v472, %v472
  %v475 = vpack.c.b16 %v473, %v473
  %478 = vst [vmem:[%s3] sm:$0xf] %v474
  %479 = vst [vmem:[%s3 + $0x4] sm:$0xf] %v475
  // Predicated region
  $region14: #{convnet_forward.6} parent=0 // pred_check
    _
  $region15: #{convnet_forward.6} parent=0 // pred_check_branch
    %481 = sbr.rel (0) target = $region17
  $region16: #{convnet_forward.6} parent=0 // pred_region
    _
  $region17: #{convnet_forward.6} parent=0 // pred_fallthru
    _
  // Predicated region
  $region18: #{convnet_forward.6} parent=0 // pred_check
    _
  $region19: #{convnet_forward.6} parent=0 // pred_check_branch
    %483 = sbr.rel (0) target = $region21
  $region20: #{convnet_forward.6} parent=0 // pred_region
    _
  $region21: #{convnet_forward.6} parent=0 // pred_fallthru
    _

</llo_original>
